<compile_context>
chip_gen: v7x
topology: tpu7x:2x2x1
jax: 0.10.0
libtpu: 0.0.40
codegen_flags: <defaults>
</compile_context>

<pallas_src>
import functools

import numpy as np
import jax
import jax.numpy as jnp
from jax import lax
from jax.experimental import pallas as pl
from jax.experimental.pallas import tpu as pltpu

KMAX = 7                    # largest conv kernel size
PAD = (KMAX - 1) // 2       # shared 'same' padding for all branches


def _pick_b_tile(B):
    """Largest divisor of B that still leaves >= 2 grid steps (v7x: 2 TCs)."""
    for d in range(B // 2, 0, -1):
        if B % d == 0:
            return d
    return 1


def _pick_chunk(S):
    """Largest divisor of S that is <= 8 (store-chunk / unroll factor)."""
    for c in range(min(S, 8), 0, -1):
        if S % c == 0:
            return c
    return 1


# ----------------------------------------------------------------------------
# One-time parameter preprocessing (hoisted out of the jitted forward).
#   w_conv : (7*C_in, 3H)  fused conv weights (zero-padded per branch), bf16
#   b_conv : (1, 3H)       concatenated conv biases, f32
#   w_ih   : (3H, 4H)      LSTM input weights, gate order [i, f, o, g], bf16
#   w_hh   : (H,  4H)      LSTM hidden weights, gate order [i, f, o, g], bf16
#   b_l    : (1, 4H)       b_ih + b_hh, gate order [i, f, o, g], f32
# ----------------------------------------------------------------------------
def preprocess_params(params, matmul_dtype=jnp.bfloat16):
    H = params["w_hh"].shape[1]
    C_in = params["w1"].shape[1]
    C3, H4 = 3 * H, 4 * H

    w_big = np.zeros((KMAX, C_in, C3), np.float32)
    for j, (wk, ksz) in enumerate((("w1", 3), ("w2", 5), ("w3", 7))):
        w = np.transpose(np.asarray(params[wk]), (2, 1, 0))   # (K, C_in, H)
        off = PAD - (ksz - 1) // 2
        w_big[off:off + ksz, :, j * H:(j + 1) * H] = w
    w_conv = w_big.reshape(KMAX * C_in, C3)
    b_conv = np.concatenate([np.asarray(params["b1"]),
                             np.asarray(params["b2"]),
                             np.asarray(params["b3"])]).reshape(1, C3)

    # PyTorch gate order [i, f, g, o]  ->  [i, f, o, g]
    perm = np.concatenate([np.arange(0, 2 * H),
                           np.arange(3 * H, 4 * H),
                           np.arange(2 * H, 3 * H)])
    w_ih = np.asarray(params["w_ih"])[perm].T                  # (3H, 4H)
    w_hh = np.asarray(params["w_hh"])[perm].T                  # (H,  4H)
    b_l = (np.asarray(params["b_ih"])
           + np.asarray(params["b_hh"]))[perm].reshape(1, H4)

    return {
        "w_conv": jnp.asarray(w_conv, matmul_dtype),
        "b_conv": jnp.asarray(b_conv, jnp.float32),
        "w_ih": jnp.asarray(w_ih, matmul_dtype),
        "w_hh": jnp.asarray(w_hh, matmul_dtype),
        "b_l": jnp.asarray(b_l, jnp.float32),
    }


# ----------------------------------------------------------------------------
# Fused kernel: one batch tile (B_tile elements) per grid step.
#   xu_ref  : (S*B_tile, 7*C_in)   unfolded input (s-major, b-minor rows)
#   wc_ref  : (7*C_in, 3H)         fused conv weights
#   bc_ref  : (1, 3H)
#   wih_ref : (3H, 4H)
#   whh_ref : (H, 4H)
#   bl_ref  : (1, 4H)
#   o_ref   : (S*B_tile, H)        hidden states (s-major, b-minor rows)
#   gx_scr  : (S*B_tile, 4H) f32   precomputed input-gate projections
# ----------------------------------------------------------------------------
def _fused_kernel(xu_ref, wc_ref, bc_ref, wih_ref, whh_ref, bl_ref, o_ref,
                  gx_scr, *, seq_len, b_tile, hidden, chunk):
    S, BT, H = seq_len, b_tile, hidden
    H3, H4 = 3 * H, 4 * H

    # ---- all 3 conv branches as ONE K = 7*C_in matmul + bias + ReLU --------
    xc = jnp.maximum(
        jnp.dot(xu_ref[...], wc_ref[...],
                preferred_element_type=jnp.float32) + bc_ref[...], 0.0)

    # ---- LSTM input projection hoisted out of the recurrence ---------------
    gx_scr[...] = (jnp.dot(xc.astype(wih_ref.dtype), wih_ref[...],
                           preferred_element_type=jnp.float32)
                   + bl_ref[...])                              # (S*BT, 4H) f32

    # full-vreg activation select mask (hoisted out of the loop):
    # lanes [0, 3H) = [i | f | o] -> sigmoid, lanes [3H, 4H) = g -> tanh.
    lane = lax.broadcasted_iota(jnp.int32, (BT, H4), dimension=1)
    is_sig = lane < H3
    whh = whh_ref[...]

    def one_step(row, h, c):
        gx = gx_scr[pl.ds(row, BT), :]                         # (BT, 4H)
        g = gx + jnp.dot(h.astype(whh.dtype), whh,
                         preferred_element_type=jnp.float32)
        act = jnp.where(is_sig, jax.nn.sigmoid(g), jnp.tanh(g))  # full-vreg EUP
        c_new = act[:, H:2 * H] * c + act[:, :H] * act[:, H3:]
        h_new = act[:, 2 * H:H3] * jnp.tanh(c_new)
        return h_new, c_new

    n_chunks = S // chunk
    rows_per_chunk = chunk * BT

    def chunk_body(ci, carry):
        h, c = carry
        base = pl.multiple_of(ci * rows_per_chunk, rows_per_chunk)
        hs = []
        for j in range(chunk):                 # static partial unroll (ILP)
            h, c = one_step(base + j * BT, h, c)
            hs.append(h)
        # one multi-row store per chunk instead of a masked store per step
        o_ref[pl.ds(base, rows_per_chunk), :] = (
            jnp.concatenate(hs, axis=0).astype(o_ref.dtype))
        return h, c

    h0 = jnp.zeros((BT, H), jnp.float32)       # state lives in vregs (carry)
    c0 = jnp.zeros((BT, H), jnp.float32)
    lax.fori_loop(0, n_chunks, chunk_body, (h0, c0))


# ----------------------------------------------------------------------------
# Full module forward: pad + unfold (cheap layout plumbing) + one pallas_call.
# ----------------------------------------------------------------------------
@jax.jit
def inception_dxlstm_forward(x, fused):
    B, S, C_in = x.shape
    H = fused["w_hh"].shape[0]
    H3, H4 = 3 * H, 4 * H
    K7C = KMAX * C_in
    mm_dtype = fused["w_conv"].dtype

    b_tile = _pick_b_tile(B)
    n_tiles = B // b_tile
    chunk = _pick_chunk(S)

    # pad ONCE (pad=3, shared by all branches) and unfold to (B, S, 7*C_in)
    x_pad = jnp.pad(x.astype(mm_dtype), ((0, 0), (PAD, PAD), (0, 0)))
    x_unf = jnp.concatenate([x_pad[:, k:k + S, :] for k in range(KMAX)],
                            axis=-1)
    # per batch-tile, s-major / b-minor row layout: (n_tiles, S*b_tile, 7*C_in)
    x_unf = (x_unf.reshape(n_tiles, b_tile, S, K7C)
                  .transpose(0, 2, 1, 3)
                  .reshape(n_tiles, S * b_tile, K7C))

    kernel = functools.partial(_fused_kernel, seq_len=S, b_tile=b_tile,
                               hidden=H, chunk=chunk)
    out = pl.pallas_call(
        kernel,
        out_shape=jax.ShapeDtypeStruct((n_tiles, S * b_tile, H), jnp.float32),
        grid=(n_tiles,),
        in_specs=[
            pl.BlockSpec((None, S * b_tile, K7C), lambda b: (b, 0, 0)),
            pl.BlockSpec((K7C, H3), lambda b: (0, 0)),
            pl.BlockSpec((1, H3), lambda b: (0, 0)),
            pl.BlockSpec((H3, H4), lambda b: (0, 0)),
            pl.BlockSpec((H, H4), lambda b: (0, 0)),
            pl.BlockSpec((1, H4), lambda b: (0, 0)),
        ],
        out_specs=pl.BlockSpec((None, S * b_tile, H), lambda b: (b, 0, 0)),
        scratch_shapes=[pltpu.VMEM((S * b_tile, H4), jnp.float32)],
        compiler_params=pltpu.CompilerParams(
            dimension_semantics=("parallel",)),
    )(x_unf, fused["w_conv"], fused["b_conv"], fused["w_ih"],
      fused["w_hh"], fused["b_l"])

    return (out.reshape(n_tiles, S, b_tile, H)
               .transpose(0, 2, 1, 3)
               .reshape(B, S, H)
               .astype(x.dtype))


# ----------------------------------------------------------------------------
# Pure-JAX reference (PyTorch semantics) for correctness check
# ----------------------------------------------------------------------------
def _ref_conv(x, w_torch, b, ksize):
    B, S, C_in = x.shape
    C_out = w_torch.shape[0]
    pad = (ksize - 1) // 2
    x_pad = jnp.pad(x, ((0, 0), (pad, pad), (0, 0)))
    acc = jnp.zeros((B, S, C_out), jnp.float32) + b
    for k in range(ksize):
        acc += jnp.einsum("bsc,co->bso", x_pad[:, k:k + S, :], w_torch[:, :, k].T)
    return jnp.maximum(acc, 0.0)


def _ref_lstm(x, w_ih, w_hh, b_ih, b_hh):
    B, S, _ = x.shape
    H = w_hh.shape[1]
    b = b_ih + b_hh

    def step(carry, x_t):
        h, c = carry
        gates = x_t @ w_ih.T + h @ w_hh.T + b
        i = jax.nn.sigmoid(gates[:, 0 * H:1 * H])
        f = jax.nn.sigmoid(gates[:, 1 * H:2 * H])
        g = jnp.tanh(gates[:, 2 * H:3 * H])
        o = jax.nn.sigmoid(gates[:, 3 * H:4 * H])
        c = f * c + i * g
        h = o * jnp.tanh(c)
        return (h, c), h

    init = (jnp.zeros((B, H), jnp.float32), jnp.zeros((B, H), jnp.float32))
    _, hs = lax.scan(step, init, jnp.transpose(x, (1, 0, 2)))
    return jnp.transpose(hs, (1, 0, 2))


def _ref_forward(x, p):
    x1 = _ref_conv(x, p["w1"], p["b1"], 3)
    x2 = _ref_conv(x, p["w2"], p["b2"], 5)
    x3 = _ref_conv(x, p["w3"], p["b3"], 7)
    xc = jnp.concatenate([x1, x2, x3], axis=-1)
    return _ref_lstm(xc, p["w_ih"], p["w_hh"], p["b_ih"], p["b_hh"])


# ----------------------------------------------------------------------------
if __name__ == "__main__":
    B, S = 2, 8
    input_size, out_size = 4, 32

    key = jax.random.PRNGKey(0)
    ks = jax.random.split(key, 12)

    def normal(k, shape, scale=0.1):
        return (scale * jax.random.normal(k, shape)).astype(jnp.float32)

    params = {
        "w1": normal(ks[0], (out_size, input_size, 3)),
        "b1": normal(ks[1], (out_size,)),
        "w2": normal(ks[2], (out_size, input_size, 5)),
        "b2": normal(ks[3], (out_size,)),
        "w3": normal(ks[4], (out_size, input_size, 7)),
        "b3": normal(ks[5], (out_size,)),
        "w_ih": normal(ks[6], (4 * out_size, 3 * out_size)),
        "w_hh": normal(ks[7], (4 * out_size, out_size)),
        "b_ih": normal(ks[8], (4 * out_size,)),
        "b_hh": normal(ks[9], (4 * out_size,)),
    }
    x = normal(ks[10], (B, S, input_size), scale=1.0)

    ref = jax.block_until_ready(_ref_forward(x, params))

    # ---- f32 MXU-operand path: tight check against the f32 reference -------
    fused_f32 = preprocess_params(params, matmul_dtype=jnp.float32)
    out_f32 = jax.block_until_ready(inception_dxlstm_forward(x, fused_f32))
    assert out_f32.shape == (B, S, out_size), out_f32.shape
    err_f32 = float(jnp.max(jnp.abs(out_f32 - ref)))
    assert err_f32 < 1e-4, err_f32

    # ---- bf16 MXU-operand fast path (v6e/v7x); f32 state/accumulation ------
    fused_bf16 = preprocess_params(params, matmul_dtype=jnp.bfloat16)
    out_bf16 = jax.block_until_ready(inception_dxlstm_forward(x, fused_bf16))
    assert out_bf16.shape == (B, S, out_size), out_bf16.shape
    err_bf16 = float(jnp.max(jnp.abs(out_bf16 - ref)))
    assert err_bf16 < 2.5e-2, err_bf16

    print("KERNEL_OK")
</pallas_src>

<mosaic_0001>
module attributes {stable_mosaic.version = 11 : i64} {
  func.func @_fused_kernel(%arg0: i32, %arg1: memref<1x8x28xf32, #tpu.memory_space<vmem>>, %arg2: memref<28x96xf32, #tpu.memory_space<vmem>>, %arg3: memref<1x96xf32, #tpu.memory_space<vmem>>, %arg4: memref<96x128xf32, #tpu.memory_space<vmem>>, %arg5: memref<32x128xf32, #tpu.memory_space<vmem>>, %arg6: memref<1x128xf32, #tpu.memory_space<vmem>>, %arg7: memref<1x8x32xf32, #tpu.memory_space<vmem>>, %arg8: memref<8x128xf32, #tpu.memory_space<vmem>>) attributes {dimension_semantics = [#tpu.dimension_semantics<parallel>], iteration_bounds = array<i64: 2>, scalar_prefetch = 0 : i64, scratch_operands = 1 : i64, tpu.core_type = #tpu.core_type<tc>, window_params = [{transform_indices = @transform_0, window_bounds = array<i64: 1, 8, 28>}, {pipeline_mode = #tpu.pipeline_mode<synchronous>, transform_indices = @transform_1, window_bounds = array<i64: 28, 96>}, {pipeline_mode = #tpu.pipeline_mode<synchronous>, transform_indices = @transform_2, window_bounds = array<i64: 1, 96>}, {pipeline_mode = #tpu.pipeline_mode<synchronous>, transform_indices = @transform_3, window_bounds = array<i64: 96, 128>}, {pipeline_mode = #tpu.pipeline_mode<synchronous>, transform_indices = @transform_4, window_bounds = array<i64: 32, 128>}, {pipeline_mode = #tpu.pipeline_mode<synchronous>, transform_indices = @transform_5, window_bounds = array<i64: 1, 128>}, {transform_indices = @transform_6, window_bounds = array<i64: 1, 8, 32>}]} {
    %c0 = arith.constant 0 : index
    %c0_0 = arith.constant 0 : index
    %c0_1 = arith.constant 0 : index
    %0 = vector.load %arg1[%c0, %c0_0, %c0_1] : memref<1x8x28xf32, #tpu.memory_space<vmem>>, vector<1x8x28xf32>
    %1 = vector.shape_cast %0 : vector<1x8x28xf32> to vector<8x28xf32>
    %c0_2 = arith.constant 0 : index
    %c0_3 = arith.constant 0 : index
    %2 = vector.load %arg2[%c0_2, %c0_3] : memref<28x96xf32, #tpu.memory_space<vmem>>, vector<28x96xf32>
    %cst = arith.constant dense<0.000000e+00> : vector<8x96xf32>
    %3 = tpu.matmul %1, %2, %cst {dimension_numbers = #tpu.dot_dimension_numbers<[1], [0], [0], [1], [0, 0, 1, 1], [], []>} : vector<8x28xf32>, vector<28x96xf32>, vector<8x96xf32> -> vector<8x96xf32>
    %c0_4 = arith.constant 0 : index
    %c0_5 = arith.constant 0 : index
    %4 = vector.load %arg3[%c0_4, %c0_5] : memref<1x96xf32, #tpu.memory_space<vmem>>, vector<1x96xf32>
    %5 = vector.broadcast %4 : vector<1x96xf32> to vector<8x96xf32>
    %6 = arith.addf %3, %5 : vector<8x96xf32>
    %cst_6 = arith.constant 0.000000e+00 : f32
    %7 = vector.broadcast %cst_6 : f32 to vector<8x96xf32>
    %8 = arith.maximumf %6, %7 : vector<8x96xf32>
    %c0_7 = arith.constant 0 : index
    %c0_8 = arith.constant 0 : index
    %9 = vector.load %arg4[%c0_7, %c0_8] : memref<96x128xf32, #tpu.memory_space<vmem>>, vector<96x128xf32>
    %cst_9 = arith.constant dense<0.000000e+00> : vector<8x128xf32>
    %10 = tpu.matmul %8, %9, %cst_9 {dimension_numbers = #tpu.dot_dimension_numbers<[1], [0], [0], [1], [0, 0, 1, 1], [], []>} : vector<8x96xf32>, vector<96x128xf32>, vector<8x128xf32> -> vector<8x128xf32>
    %c0_10 = arith.constant 0 : index
    %c0_11 = arith.constant 0 : index
    %11 = vector.load %arg6[%c0_10, %c0_11] : memref<1x128xf32, #tpu.memory_space<vmem>>, vector<1x128xf32>
    %12 = vector.broadcast %11 : vector<1x128xf32> to vector<8x128xf32>
    %13 = arith.addf %10, %12 : vector<8x128xf32>
    %c0_12 = arith.constant 0 : index
    %c0_13 = arith.constant 0 : index
    %14 = vector.load %arg8[%c0_12, %c0_13] : memref<8x128xf32, #tpu.memory_space<vmem>>, vector<8x128xf32>
    tpu.vector_store %arg8[%c0_12, %c0_13], %13 {strides = array<i32>} : memref<8x128xf32, #tpu.memory_space<vmem>>, vector<8x128xf32>,
    %15 = tpu.iota {dimensions = array<i32: 1>} : vector<1x128xi32>
    %c96_i32 = arith.constant 96 : i32
    %16 = vector.broadcast %c96_i32 : i32 to vector<1x128xi32>
    %17 = arith.cmpi slt, %15, %16 : vector<1x128xi32>
    %c0_14 = arith.constant 0 : index
    %c0_15 = arith.constant 0 : index
    %18 = vector.load %arg5[%c0_14, %c0_15] : memref<32x128xf32, #tpu.memory_space<vmem>>, vector<32x128xf32>
    %cst_16 = arith.constant 0.000000e+00 : f32
    %19 = vector.broadcast %cst_16 : f32 to vector<1x32xf32>
    %cst_17 = arith.constant 0.000000e+00 : f32
    %20 = vector.broadcast %cst_17 : f32 to vector<1x32xf32>
    %c0_i32 = arith.constant 0 : i32
    %c8_i32 = arith.constant 8 : i32
    %21 = arith.muli %c0_i32, %c8_i32 : i32
    %22 = tpu.assume_multiple %21, 8 : i32
    %c0_i32_18 = arith.constant 0 : i32
    %23 = arith.addi %22, %c0_i32_18 : i32
    %24 = arith.index_cast %23 : i32 to index
    %c0_19 = arith.constant 0 : index
    %25 = vector.load %arg8[%24, %c0_19] : memref<8x128xf32, #tpu.memory_space<vmem>>, vector<1x128xf32>
    %cst_20 = arith.constant dense<0.000000e+00> : vector<1x128xf32>
    %26 = tpu.matmul %19, %18, %cst_20 {dimension_numbers = #tpu.dot_dimension_numbers<[1], [0], [0], [1], [0, 0, 1, 1], [], []>} : vector<1x32xf32>, vector<32x128xf32>, vector<1x128xf32> -> vector<1x128xf32>
    %27 = arith.addf %25, %26 : vector<1x128xf32>
    %28 = arith.negf %27 : vector<1x128xf32>
    %29 = math.exp %28 : vector<1x128xf32>
    %cst_21 = arith.constant 1.000000e+00 : f32
    %30 = vector.broadcast %cst_21 : f32 to vector<1x128xf32>
    %31 = arith.addf %30, %29 : vector<1x128xf32>
    %32 = arith.divf %30, %31 : vector<1x128xf32>
    %33 = math.tanh %27 : vector<1x128xf32>
    %34 = arith.select %17, %32, %33 : vector<1x128xi1>, vector<1x128xf32>
    %35 = vector.extract_strided_slice %34 {offsets = [0, 32], sizes = [1, 32], strides = [1, 1]} : vector<1x128xf32> to vector<1x32xf32>
    %36 = arith.mulf %35, %20 : vector<1x32xf32>
    %37 = vector.extract_strided_slice %34 {offsets = [0, 0], sizes = [1, 32], strides = [1, 1]} : vector<1x128xf32> to vector<1x32xf32>
    %38 = vector.extract_strided_slice %34 {offsets = [0, 96], sizes = [1, 32], strides = [1, 1]} : vector<1x128xf32> to vector<1x32xf32>
    %39 = arith.mulf %37, %38 : vector<1x32xf32>
    %40 = arith.addf %36, %39 : vector<1x32xf32>
    %41 = vector.extract_strided_slice %34 {offsets = [0, 64], sizes = [1, 32], strides = [1, 1]} : vector<1x128xf32> to vector<1x32xf32>
    %42 = math.tanh %40 : vector<1x32xf32>
    %43 = arith.mulf %41, %42 : vector<1x32xf32>
    %c1_i32 = arith.constant 1 : i32
    %44 = arith.addi %22, %c1_i32 : i32
    %45 = arith.index_cast %44 : i32 to index
    %c0_22 = arith.constant 0 : index
    %46 = vector.load %arg8[%45, %c0_22] : memref<8x128xf32, #tpu.memory_space<vmem>>, vector<1x128xf32>
    %cst_23 = arith.constant dense<0.000000e+00> : vector<1x128xf32>
    %47 = tpu.matmul %43, %18, %cst_23 {dimension_numbers = #tpu.dot_dimension_numbers<[1], [0], [0], [1], [0, 0, 1, 1], [], []>} : vector<1x32xf32>, vector<32x128xf32>, vector<1x128xf32> -> vector<1x128xf32>
    %48 = arith.addf %46, %47 : vector<1x128xf32>
    %49 = arith.negf %48 : vector<1x128xf32>
    %50 = math.exp %49 : vector<1x128xf32>
    %cst_24 = arith.constant 1.000000e+00 : f32
    %51 = vector.broadcast %cst_24 : f32 to vector<1x128xf32>
    %52 = arith.addf %51, %50 : vector<1x128xf32>
    %53 = arith.divf %51, %52 : vector<1x128xf32>
    %54 = math.tanh %48 : vector<1x128xf32>
    %55 = arith.select %17, %53, %54 : vector<1x128xi1>, vector<1x128xf32>
    %56 = vector.extract_strided_slice %55 {offsets = [0, 32], sizes = [1, 32], strides = [1, 1]} : vector<1x128xf32> to vector<1x32xf32>
    %57 = arith.mulf %56, %40 : vector<1x32xf32>
    %58 = vector.extract_strided_slice %55 {offsets = [0, 0], sizes = [1, 32], strides = [1, 1]} : vector<1x128xf32> to vector<1x32xf32>
    %59 = vector.extract_strided_slice %55 {offsets = [0, 96], sizes = [1, 32], strides = [1, 1]} : vector<1x128xf32> to vector<1x32xf32>
    %60 = arith.mulf %58, %59 : vector<1x32xf32>
    %61 = arith.addf %57, %60 : vector<1x32xf32>
    %62 = vector.extract_strided_slice %55 {offsets = [0, 64], sizes = [1, 32], strides = [1, 1]} : vector<1x128xf32> to vector<1x32xf32>
    %63 = math.tanh %61 : vector<1x32xf32>
    %64 = arith.mulf %62, %63 : vector<1x32xf32>
    %c2_i32 = arith.constant 2 : i32
    %65 = arith.addi %22, %c2_i32 : i32
    %66 = arith.index_cast %65 : i32 to index
    %c0_25 = arith.constant 0 : index
    %67 = vector.load %arg8[%66, %c0_25] : memref<8x128xf32, #tpu.memory_space<vmem>>, vector<1x128xf32>
    %cst_26 = arith.constant dense<0.000000e+00> : vector<1x128xf32>
    %68 = tpu.matmul %64, %18, %cst_26 {dimension_numbers = #tpu.dot_dimension_numbers<[1], [0], [0], [1], [0, 0, 1, 1], [], []>} : vector<1x32xf32>, vector<32x128xf32>, vector<1x128xf32> -> vector<1x128xf32>
    %69 = arith.addf %67, %68 : vector<1x128xf32>
    %70 = arith.negf %69 : vector<1x128xf32>
    %71 = math.exp %70 : vector<1x128xf32>
    %cst_27 = arith.constant 1.000000e+00 : f32
    %72 = vector.broadcast %cst_27 : f32 to vector<1x128xf32>
    %73 = arith.addf %72, %71 : vector<1x128xf32>
    %74 = arith.divf %72, %73 : vector<1x128xf32>
    %75 = math.tanh %69 : vector<1x128xf32>
    %76 = arith.select %17, %74, %75 : vector<1x128xi1>, vector<1x128xf32>
    %77 = vector.extract_strided_slice %76 {offsets = [0, 32], sizes = [1, 32], strides = [1, 1]} : vector<1x128xf32> to vector<1x32xf32>
    %78 = arith.mulf %77, %61 : vector<1x32xf32>
    %79 = vector.extract_strided_slice %76 {offsets = [0, 0], sizes = [1, 32], strides = [1, 1]} : vector<1x128xf32> to vector<1x32xf32>
    %80 = vector.extract_strided_slice %76 {offsets = [0, 96], sizes = [1, 32], strides = [1, 1]} : vector<1x128xf32> to vector<1x32xf32>
    %81 = arith.mulf %79, %80 : vector<1x32xf32>
    %82 = arith.addf %78, %81 : vector<1x32xf32>
    %83 = vector.extract_strided_slice %76 {offsets = [0, 64], sizes = [1, 32], strides = [1, 1]} : vector<1x128xf32> to vector<1x32xf32>
    %84 = math.tanh %82 : vector<1x32xf32>
    %85 = arith.mulf %83, %84 : vector<1x32xf32>
    %c3_i32 = arith.constant 3 : i32
    %86 = arith.addi %22, %c3_i32 : i32
    %87 = arith.index_cast %86 : i32 to index
    %c0_28 = arith.constant 0 : index
    %88 = vector.load %arg8[%87, %c0_28] : memref<8x128xf32, #tpu.memory_space<vmem>>, vector<1x128xf32>
    %cst_29 = arith.constant dense<0.000000e+00> : vector<1x128xf32>
    %89 = tpu.matmul %85, %18, %cst_29 {dimension_numbers = #tpu.dot_dimension_numbers<[1], [0], [0], [1], [0, 0, 1, 1], [], []>} : vector<1x32xf32>, vector<32x128xf32>, vector<1x128xf32> -> vector<1x128xf32>
    %90 = arith.addf %88, %89 : vector<1x128xf32>
    %91 = arith.negf %90 : vector<1x128xf32>
    %92 = math.exp %91 : vector<1x128xf32>
    %cst_30 = arith.constant 1.000000e+00 : f32
    %93 = vector.broadcast %cst_30 : f32 to vector<1x128xf32>
    %94 = arith.addf %93, %92 : vector<1x128xf32>
    %95 = arith.divf %93, %94 : vector<1x128xf32>
    %96 = math.tanh %90 : vector<1x128xf32>
    %97 = arith.select %17, %95, %96 : vector<1x128xi1>, vector<1x128xf32>
    %98 = vector.extract_strided_slice %97 {offsets = [0, 32], sizes = [1, 32], strides = [1, 1]} : vector<1x128xf32> to vector<1x32xf32>
    %99 = arith.mulf %98, %82 : vector<1x32xf32>
    %100 = vector.extract_strided_slice %97 {offsets = [0, 0], sizes = [1, 32], strides = [1, 1]} : vector<1x128xf32> to vector<1x32xf32>
    %101 = vector.extract_strided_slice %97 {offsets = [0, 96], sizes = [1, 32], strides = [1, 1]} : vector<1x128xf32> to vector<1x32xf32>
    %102 = arith.mulf %100, %101 : vector<1x32xf32>
    %103 = arith.addf %99, %102 : vector<1x32xf32>
    %104 = vector.extract_strided_slice %97 {offsets = [0, 64], sizes = [1, 32], strides = [1, 1]} : vector<1x128xf32> to vector<1x32xf32>
    %105 = math.tanh %103 : vector<1x32xf32>
    %106 = arith.mulf %104, %105 : vector<1x32xf32>
    %c4_i32 = arith.constant 4 : i32
    %107 = arith.addi %22, %c4_i32 : i32
    %108 = arith.index_cast %107 : i32 to index
    %c0_31 = arith.constant 0 : index
    %109 = vector.load %arg8[%108, %c0_31] : memref<8x128xf32, #tpu.memory_space<vmem>>, vector<1x128xf32>
    %cst_32 = arith.constant dense<0.000000e+00> : vector<1x128xf32>
    %110 = tpu.matmul %106, %18, %cst_32 {dimension_numbers = #tpu.dot_dimension_numbers<[1], [0], [0], [1], [0, 0, 1, 1], [], []>} : vector<1x32xf32>, vector<32x128xf32>, vector<1x128xf32> -> vector<1x128xf32>
    %111 = arith.addf %109, %110 : vector<1x128xf32>
    %112 = arith.negf %111 : vector<1x128xf32>
    %113 = math.exp %112 : vector<1x128xf32>
    %cst_33 = arith.constant 1.000000e+00 : f32
    %114 = vector.broadcast %cst_33 : f32 to vector<1x128xf32>
    %115 = arith.addf %114, %113 : vector<1x128xf32>
    %116 = arith.divf %114, %115 : vector<1x128xf32>
    %117 = math.tanh %111 : vector<1x128xf32>
    %118 = arith.select %17, %116, %117 : vector<1x128xi1>, vector<1x128xf32>
    %119 = vector.extract_strided_slice %118 {offsets = [0, 32], sizes = [1, 32], strides = [1, 1]} : vector<1x128xf32> to vector<1x32xf32>
    %120 = arith.mulf %119, %103 : vector<1x32xf32>
    %121 = vector.extract_strided_slice %118 {offsets = [0, 0], sizes = [1, 32], strides = [1, 1]} : vector<1x128xf32> to vector<1x32xf32>
    %122 = vector.extract_strided_slice %118 {offsets = [0, 96], sizes = [1, 32], strides = [1, 1]} : vector<1x128xf32> to vector<1x32xf32>
    %123 = arith.mulf %121, %122 : vector<1x32xf32>
    %124 = arith.addf %120, %123 : vector<1x32xf32>
    %125 = vector.extract_strided_slice %118 {offsets = [0, 64], sizes = [1, 32], strides = [1, 1]} : vector<1x128xf32> to vector<1x32xf32>
    %126 = math.tanh %124 : vector<1x32xf32>
    %127 = arith.mulf %125, %126 : vector<1x32xf32>
    %c5_i32 = arith.constant 5 : i32
    %128 = arith.addi %22, %c5_i32 : i32
    %129 = arith.index_cast %128 : i32 to index
    %c0_34 = arith.constant 0 : index
    %130 = vector.load %arg8[%129, %c0_34] : memref<8x128xf32, #tpu.memory_space<vmem>>, vector<1x128xf32>
    %cst_35 = arith.constant dense<0.000000e+00> : vector<1x128xf32>
    %131 = tpu.matmul %127, %18, %cst_35 {dimension_numbers = #tpu.dot_dimension_numbers<[1], [0], [0], [1], [0, 0, 1, 1], [], []>} : vector<1x32xf32>, vector<32x128xf32>, vector<1x128xf32> -> vector<1x128xf32>
    %132 = arith.addf %130, %131 : vector<1x128xf32>
    %133 = arith.negf %132 : vector<1x128xf32>
    %134 = math.exp %133 : vector<1x128xf32>
    %cst_36 = arith.constant 1.000000e+00 : f32
    %135 = vector.broadcast %cst_36 : f32 to vector<1x128xf32>
    %136 = arith.addf %135, %134 : vector<1x128xf32>
    %137 = arith.divf %135, %136 : vector<1x128xf32>
    %138 = math.tanh %132 : vector<1x128xf32>
    %139 = arith.select %17, %137, %138 : vector<1x128xi1>, vector<1x128xf32>
    %140 = vector.extract_strided_slice %139 {offsets = [0, 32], sizes = [1, 32], strides = [1, 1]} : vector<1x128xf32> to vector<1x32xf32>
    %141 = arith.mulf %140, %124 : vector<1x32xf32>
    %142 = vector.extract_strided_slice %139 {offsets = [0, 0], sizes = [1, 32], strides = [1, 1]} : vector<1x128xf32> to vector<1x32xf32>
    %143 = vector.extract_strided_slice %139 {offsets = [0, 96], sizes = [1, 32], strides = [1, 1]} : vector<1x128xf32> to vector<1x32xf32>
    %144 = arith.mulf %142, %143 : vector<1x32xf32>
    %145 = arith.addf %141, %144 : vector<1x32xf32>
    %146 = vector.extract_strided_slice %139 {offsets = [0, 64], sizes = [1, 32], strides = [1, 1]} : vector<1x128xf32> to vector<1x32xf32>
    %147 = math.tanh %145 : vector<1x32xf32>
    %148 = arith.mulf %146, %147 : vector<1x32xf32>
    %c6_i32 = arith.constant 6 : i32
    %149 = arith.addi %22, %c6_i32 : i32
    %150 = arith.index_cast %149 : i32 to index
    %c0_37 = arith.constant 0 : index
    %151 = vector.load %arg8[%150, %c0_37] : memref<8x128xf32, #tpu.memory_space<vmem>>, vector<1x128xf32>
    %cst_38 = arith.constant dense<0.000000e+00> : vector<1x128xf32>
    %152 = tpu.matmul %148, %18, %cst_38 {dimension_numbers = #tpu.dot_dimension_numbers<[1], [0], [0], [1], [0, 0, 1, 1], [], []>} : vector<1x32xf32>, vector<32x128xf32>, vector<1x128xf32> -> vector<1x128xf32>
    %153 = arith.addf %151, %152 : vector<1x128xf32>
    %154 = arith.negf %153 : vector<1x128xf32>
    %155 = math.exp %154 : vector<1x128xf32>
    %cst_39 = arith.constant 1.000000e+00 : f32
    %156 = vector.broadcast %cst_39 : f32 to vector<1x128xf32>
    %157 = arith.addf %156, %155 : vector<1x128xf32>
    %158 = arith.divf %156, %157 : vector<1x128xf32>
    %159 = math.tanh %153 : vector<1x128xf32>
    %160 = arith.select %17, %158, %159 : vector<1x128xi1>, vector<1x128xf32>
    %161 = vector.extract_strided_slice %160 {offsets = [0, 32], sizes = [1, 32], strides = [1, 1]} : vector<1x128xf32> to vector<1x32xf32>
    %162 = arith.mulf %161, %145 : vector<1x32xf32>
    %163 = vector.extract_strided_slice %160 {offsets = [0, 0], sizes = [1, 32], strides = [1, 1]} : vector<1x128xf32> to vector<1x32xf32>
    %164 = vector.extract_strided_slice %160 {offsets = [0, 96], sizes = [1, 32], strides = [1, 1]} : vector<1x128xf32> to vector<1x32xf32>
    %165 = arith.mulf %163, %164 : vector<1x32xf32>
    %166 = arith.addf %162, %165 : vector<1x32xf32>
    %167 = vector.extract_strided_slice %160 {offsets = [0, 64], sizes = [1, 32], strides = [1, 1]} : vector<1x128xf32> to vector<1x32xf32>
    %168 = math.tanh %166 : vector<1x32xf32>
    %169 = arith.mulf %167, %168 : vector<1x32xf32>
    %c7_i32 = arith.constant 7 : i32
    %170 = arith.addi %22, %c7_i32 : i32
    %171 = arith.index_cast %170 : i32 to index
    %c0_40 = arith.constant 0 : index
    %172 = vector.load %arg8[%171, %c0_40] : memref<8x128xf32, #tpu.memory_space<vmem>>, vector<1x128xf32>
    %cst_41 = arith.constant dense<0.000000e+00> : vector<1x128xf32>
    %173 = tpu.matmul %169, %18, %cst_41 {dimension_numbers = #tpu.dot_dimension_numbers<[1], [0], [0], [1], [0, 0, 1, 1], [], []>} : vector<1x32xf32>, vector<32x128xf32>, vector<1x128xf32> -> vector<1x128xf32>
    %174 = arith.addf %172, %173 : vector<1x128xf32>
    %175 = arith.negf %174 : vector<1x128xf32>
    %176 = math.exp %175 : vector<1x128xf32>
    %cst_42 = arith.constant 1.000000e+00 : f32
    %177 = vector.broadcast %cst_42 : f32 to vector<1x128xf32>
    %178 = arith.addf %177, %176 : vector<1x128xf32>
    %179 = arith.divf %177, %178 : vector<1x128xf32>
    %180 = math.tanh %174 : vector<1x128xf32>
    %181 = arith.select %17, %179, %180 : vector<1x128xi1>, vector<1x128xf32>
    %182 = vector.extract_strided_slice %181 {offsets = [0, 32], sizes = [1, 32], strides = [1, 1]} : vector<1x128xf32> to vector<1x32xf32>
    %183 = arith.mulf %182, %166 : vector<1x32xf32>
    %184 = vector.extract_strided_slice %181 {offsets = [0, 0], sizes = [1, 32], strides = [1, 1]} : vector<1x128xf32> to vector<1x32xf32>
    %185 = vector.extract_strided_slice %181 {offsets = [0, 96], sizes = [1, 32], strides = [1, 1]} : vector<1x128xf32> to vector<1x32xf32>
    %186 = arith.mulf %184, %185 : vector<1x32xf32>
    %187 = arith.addf %183, %186 : vector<1x32xf32>
    %188 = vector.extract_strided_slice %181 {offsets = [0, 64], sizes = [1, 32], strides = [1, 1]} : vector<1x128xf32> to vector<1x32xf32>
    %189 = math.tanh %187 : vector<1x32xf32>
    %190 = arith.mulf %188, %189 : vector<1x32xf32>
    %191 = tpu.concatenate %43, %64, %85, %106, %127, %148, %169, %190 in 0 : vector<1x32xf32>, vector<1x32xf32>, vector<1x32xf32>, vector<1x32xf32>, vector<1x32xf32>, vector<1x32xf32>, vector<1x32xf32>, vector<1x32xf32> -> vector<8x32xf32>
    %c0_43 = arith.constant 0 : index
    %192 = arith.index_cast %22 : i32 to index
    %c0_44 = arith.constant 0 : index
    %193 = vector.load %arg7[%c0_43, %192, %c0_44] : memref<1x8x32xf32, #tpu.memory_space<vmem>>, vector<1x8x32xf32>
    %194 = vector.shape_cast %193 : vector<1x8x32xf32> to vector<8x32xf32>
    %195 = vector.shape_cast %191 : vector<8x32xf32> to vector<1x8x32xf32>
    tpu.vector_store %arg7[%c0_43, %192, %c0_44], %195 {strides = array<i32>} : memref<1x8x32xf32, #tpu.memory_space<vmem>>, vector<1x8x32xf32>,
    %c1_i32_45 = arith.constant 1 : i32
    return
  }
  func.func @transform_0(%arg0: i32) -> (i32, i32, i32) {
    %c0_i32 = arith.constant 0 : i32
    %c0_i32_0 = arith.constant 0 : i32
    %c0_i32_1 = arith.constant 0 : i32
    return %arg0, %c0_i32, %c0_i32_0 : i32, i32, i32
  }
  func.func @transform_1(%arg0: i32) -> (i32, i32) {
    %c0_i32 = arith.constant 0 : i32
    %c0_i32_0 = arith.constant 0 : i32
    %c0_i32_1 = arith.constant 0 : i32
    return %c0_i32, %c0_i32_0 : i32, i32
  }
  func.func @transform_2(%arg0: i32) -> (i32, i32) {
    %c0_i32 = arith.constant 0 : i32
    %c0_i32_0 = arith.constant 0 : i32
    %c0_i32_1 = arith.constant 0 : i32
    return %c0_i32, %c0_i32_0 : i32, i32
  }
  func.func @transform_3(%arg0: i32) -> (i32, i32) {
    %c0_i32 = arith.constant 0 : i32
    %c0_i32_0 = arith.constant 0 : i32
    %c0_i32_1 = arith.constant 0 : i32
    return %c0_i32, %c0_i32_0 : i32, i32
  }
  func.func @transform_4(%arg0: i32) -> (i32, i32) {
    %c0_i32 = arith.constant 0 : i32
    %c0_i32_0 = arith.constant 0 : i32
    %c0_i32_1 = arith.constant 0 : i32
    return %c0_i32, %c0_i32_0 : i32, i32
  }
  func.func @transform_5(%arg0: i32) -> (i32, i32) {
    %c0_i32 = arith.constant 0 : i32
    %c0_i32_0 = arith.constant 0 : i32
    %c0_i32_1 = arith.constant 0 : i32
    return %c0_i32, %c0_i32_0 : i32, i32
  }
  func.func @transform_6(%arg0: i32) -> (i32, i32, i32) {
    %c0_i32 = arith.constant 0 : i32
    %c0_i32_0 = arith.constant 0 : i32
    %c0_i32_1 = arith.constant 0 : i32
    return %arg0, %c0_i32, %c0_i32_0 : i32, i32, i32
  }
}

</mosaic_0001>

<llo_original>
// kernel: inception_dxlstm_forward.1
$region0: #{inception_dxlstm_forward.1}
  #allocation0 [shape = 'u32[]', space=smem, size = 0x4, offset = 0x4, fixed_abs, tag = 'smem constant byte address 0x4 - core index']
  #allocation1 [shape = 'u32[144,128]{1,0:T(1,128)}', space=vmem, size = 0x12000, scoped, tag = 'internal scratch']
  #allocation2 [shape = 'f32[8,128]{1,0:T(8,128)}', space=vmem, size = 0x1000, scoped, tag = 'scratch operand']
  %s0 = inlined_call_operand.vmem [shape: f32[2,8,28], index: 0, kind: input, shape index: {}]
  %s1 = inlined_call_operand.vmem [shape: f32[28,96], index: 1, kind: input, shape index: {}]
  %s2 = inlined_call_operand.vmem [shape: f32[1,96], index: 2, kind: input, shape index: {}]
  %s3 = inlined_call_operand.vmem [shape: f32[96,128], index: 3, kind: input, shape index: {}]
  %s4 = inlined_call_operand.vmem [shape: f32[32,128], index: 4, kind: input, shape index: {}]
  %s5 = inlined_call_operand.vmem [shape: f32[1,128], index: 5, kind: input, shape index: {}]
  %s6 = inlined_call_operand.hbm [shape: f32[2,8,32], index: 6, kind: output, shape index: {}]
  %s7 = sld [smem:[#allocation0]]
  $region57: #{inception_dxlstm_forward.1} parent=0
    _
  %s9 = ssub.s32 1, %s7
  %s10 = scalar_select 0, %s9, %s7
  $region1: #{inception_dxlstm_forward.1} parent=0
    #allocation3 [shape = 'u8[8192]{0}', space=vmem, size = 0x2000, scoped, tag = 'output window, operand 0']
    #allocation4 [shape = 's32[2]{0}', space=sflag, size = 0x8, scoped, tag = 'scoped memory for inception_dxlstm_forward.1']
    %11 = vsyncpa [#allocation4], 0
    %s12 = scalar_lea.sflag [#allocation4], 1
    %13 = vsyncpa %s12, 0
    loop: start=0, step=1, limit=4
    $region2: #{inception_dxlstm_forward.1} parent=1 // loop_pre_header
      _
    $region3: #{inception_dxlstm_forward.1} parent=1 // loop_header
      %s15 = sphi 0, %s19
      %p16 = scmp.ge.s32.totalorder %s15, 4
      %s25 = sphi 0, %s27
      %s28 = sphi 0, %s25
      %s29 = sphi 0, %s28
      %s45 = sphi 0, %s29
      %s49 = sphi 0, %s49
      %s51 = sphi 0, %s49
      %s52 = sphi 0, %s51
      %s66 = sphi 0, %s52
      %s70 = sphi 0, %s70
      %s72 = sphi 0, %s70
      %s73 = sphi 0, %s72
      %s87 = sphi 0, %s73
      %s91 = sphi 0, %s91
      %s93 = sphi 0, %s91
      %s94 = sphi 0, %s93
      %s108 = sphi 0, %s94
      %s112 = sphi 0, %s112
      %s114 = sphi 0, %s112
      %s115 = sphi 0, %s114
      %s129 = sphi 0, %s115
      %s133 = sphi 0, %s133
      %s135 = sphi 0, %s133
      %s136 = sphi 0, %s135
      %s150 = sphi 0, %s136
      %s156 = sphi 0, %s158
      %s159 = sphi 0, %s156
      %s160 = sphi 0, %s159
      %s176 = sphi 0, %s160
    $region4: #{inception_dxlstm_forward.1} parent=1 // loop_header_branch
      %18 = sbr.rel (%p16) target = $region8
    $region5: #{inception_dxlstm_forward.1} parent=1 // loop_body
      %s20 = ssub.s32 %s15, 1
      %s21 = ssub.s32 %s15, 2
      %s22 = sadd.s32 %s15, 1
      %s23 = ssub.s32 %s15, %s22
      %p24 = scmp.eq.s32.totalorder %s23, 0
      %s26 = sadd.s32 %s25, 1
      %s27 = scalar_select %p24, %s25, %s26
      %p30 = pneg %p24
      %p31 = scmp.eq.s32.totalorder %s15, 1
      %p32 = por %p30, %p31
      %p33 = scmp.ne.s32.totalorder %s25, %s28
      %p34 = scmp.eq.s32.totalorder %s15, 0
      %p35 = por %p33, %p34
      %p36 = scmp.ne.s32.totalorder %s25, %s28
      %p37 = scmp.eq.s32.totalorder %s20, 1
      %p38 = por %p36, %p37
      %p39 = scmp.ne.s32.totalorder %s28, %s29
      %p40 = scmp.eq.s32.totalorder %s20, 0
      %p41 = por %p39, %p40
      %p42 = scmp.ne.s32.totalorder %s28, %s29
      %p43 = scmp.eq.s32.totalorder %s21, 1
      %p44 = por %p42, %p43
      %p46 = scmp.ne.s32.totalorder %s29, %s45
      %p47 = scmp.eq.s32.totalorder %s21, 0
      %p48 = por %p46, %p47
      %s50 = sadd.s32 %s49, 1
      %p53 = scmp.eq.s32.totalorder %s15, 1
      %p54 = scmp.ne.s32.totalorder %s49, %s51
      %p55 = scmp.eq.s32.totalorder %s15, 0
      %p56 = por %p54, %p55
      %p57 = scmp.ne.s32.totalorder %s49, %s51
      %p58 = scmp.eq.s32.totalorder %s20, 1
      %p59 = por %p57, %p58
      %p60 = scmp.ne.s32.totalorder %s51, %s52
      %p61 = scmp.eq.s32.totalorder %s20, 0
      %p62 = por %p60, %p61
      %p63 = scmp.ne.s32.totalorder %s51, %s52
      %p64 = scmp.eq.s32.totalorder %s21, 1
      %p65 = por %p63, %p64
      %p67 = scmp.ne.s32.totalorder %s52, %s66
      %p68 = scmp.eq.s32.totalorder %s21, 0
      %p69 = por %p67, %p68
      %s71 = sadd.s32 %s70, 1
      %p74 = scmp.eq.s32.totalorder %s15, 1
      %p75 = scmp.ne.s32.totalorder %s70, %s72
      %p76 = scmp.eq.s32.totalorder %s15, 0
      %p77 = por %p75, %p76
      %p78 = scmp.ne.s32.totalorder %s70, %s72
      %p79 = scmp.eq.s32.totalorder %s20, 1
      %p80 = por %p78, %p79
      %p81 = scmp.ne.s32.totalorder %s72, %s73
      %p82 = scmp.eq.s32.totalorder %s20, 0
      %p83 = por %p81, %p82
      %p84 = scmp.ne.s32.totalorder %s72, %s73
      %p85 = scmp.eq.s32.totalorder %s21, 1
      %p86 = por %p84, %p85
      %p88 = scmp.ne.s32.totalorder %s73, %s87
      %p89 = scmp.eq.s32.totalorder %s21, 0
      %p90 = por %p88, %p89
      %s92 = sadd.s32 %s91, 1
      %p95 = scmp.eq.s32.totalorder %s15, 1
      %p96 = scmp.ne.s32.totalorder %s91, %s93
      %p97 = scmp.eq.s32.totalorder %s15, 0
      %p98 = por %p96, %p97
      %p99 = scmp.ne.s32.totalorder %s91, %s93
      %p100 = scmp.eq.s32.totalorder %s20, 1
      %p101 = por %p99, %p100
      %p102 = scmp.ne.s32.totalorder %s93, %s94
      %p103 = scmp.eq.s32.totalorder %s20, 0
      %p104 = por %p102, %p103
      %p105 = scmp.ne.s32.totalorder %s93, %s94
      %p106 = scmp.eq.s32.totalorder %s21, 1
      %p107 = por %p105, %p106
      %p109 = scmp.ne.s32.totalorder %s94, %s108
      %p110 = scmp.eq.s32.totalorder %s21, 0
      %p111 = por %p109, %p110
      %s113 = sadd.s32 %s112, 1
      %p116 = scmp.eq.s32.totalorder %s15, 1
      %p117 = scmp.ne.s32.totalorder %s112, %s114
      %p118 = scmp.eq.s32.totalorder %s15, 0
      %p119 = por %p117, %p118
      %p120 = scmp.ne.s32.totalorder %s112, %s114
      %p121 = scmp.eq.s32.totalorder %s20, 1
      %p122 = por %p120, %p121
      %p123 = scmp.ne.s32.totalorder %s114, %s115
      %p124 = scmp.eq.s32.totalorder %s20, 0
      %p125 = por %p123, %p124
      %p126 = scmp.ne.s32.totalorder %s114, %s115
      %p127 = scmp.eq.s32.totalorder %s21, 1
      %p128 = por %p126, %p127
      %p130 = scmp.ne.s32.totalorder %s115, %s129
      %p131 = scmp.eq.s32.totalorder %s21, 0
      %p132 = por %p130, %p131
      %s134 = sadd.s32 %s133, 1
      %p137 = scmp.eq.s32.totalorder %s15, 1
      %p138 = scmp.ne.s32.totalorder %s133, %s135
      %p139 = scmp.eq.s32.totalorder %s15, 0
      %p140 = por %p138, %p139
      %p141 = scmp.ne.s32.totalorder %s133, %s135
      %p142 = scmp.eq.s32.totalorder %s20, 1
      %p143 = por %p141, %p142
      %p144 = scmp.ne.s32.totalorder %s135, %s136
      %p145 = scmp.eq.s32.totalorder %s20, 0
      %p146 = por %p144, %p145
      %p147 = scmp.ne.s32.totalorder %s135, %s136
      %p148 = scmp.eq.s32.totalorder %s21, 1
      %p149 = por %p147, %p148
      %p151 = scmp.ne.s32.totalorder %s136, %s150
      %p152 = scmp.eq.s32.totalorder %s21, 0
      %p153 = por %p151, %p152
      %s154 = ssub.s32 %s15, %s22
      %p155 = scmp.eq.s32.totalorder %s154, 0
      %s157 = sadd.s32 %s156, 1
      %s158 = scalar_select %p155, %s156, %s157
      %p161 = pneg %p155
      %p162 = scmp.eq.s32.totalorder %s15, 1
      %p163 = por %p161, %p162
      %p164 = scmp.ne.s32.totalorder %s156, %s159
      %p165 = scmp.eq.s32.totalorder %s15, 0
      %p166 = por %p164, %p165
      %p167 = scmp.ne.s32.totalorder %s156, %s159
      %p168 = scmp.eq.s32.totalorder %s20, 1
      %p169 = por %p167, %p168
      %p170 = scmp.ne.s32.totalorder %s159, %s160
      %p171 = scmp.eq.s32.totalorder %s20, 0
      %p172 = por %p170, %p171
      %p173 = scmp.ne.s32.totalorder %s159, %s160
      %p174 = scmp.eq.s32.totalorder %s21, 1
      %p175 = por %p173, %p174
      %p177 = scmp.ne.s32.totalorder %s160, %s176
      %p178 = scmp.eq.s32.totalorder %s21, 0
      %p179 = por %p177, %p178
      %p180 = scmp.le.s32.totalorder 1, %s15
      %p181 = scmp.lt.s32.totalorder %s15, 3
      %p182 = pnand %p180, %p181
      %p183 = pneg %p182
      // Predicated region
      $region9: #{inception_dxlstm_forward.1} parent=5 // pred_check
        _
      $region10: #{inception_dxlstm_forward.1} parent=5 // pred_check_branch
        %185 = sbr.rel (%p182) target = $region12
      $region11: #{inception_dxlstm_forward.1} parent=5 // pred_region
        %s186 = ssub.s32 %s15, 1
        // Predicated region
        $region13: #{inception_dxlstm_forward.1} parent=11 // pred_check
          %p187 = pneg %p62
        $region14: #{inception_dxlstm_forward.1} parent=11 // pred_check_branch
          %189 = sbr.rel (%p187) target = $region16
        $region15: #{inception_dxlstm_forward.1} parent=11 // pred_region
          _
        $region16: #{inception_dxlstm_forward.1} parent=11 // pred_fallthru
          _
        // Predicated region
        $region17: #{inception_dxlstm_forward.1} parent=11 // pred_check
          %p190 = pneg %p83
        $region18: #{inception_dxlstm_forward.1} parent=11 // pred_check_branch
          %192 = sbr.rel (%p190) target = $region20
        $region19: #{inception_dxlstm_forward.1} parent=11 // pred_region
          _
        $region20: #{inception_dxlstm_forward.1} parent=11 // pred_fallthru
          _
        // Predicated region
        $region21: #{inception_dxlstm_forward.1} parent=11 // pred_check
          %p193 = pneg %p104
        $region22: #{inception_dxlstm_forward.1} parent=11 // pred_check_branch
          %195 = sbr.rel (%p193) target = $region24
        $region23: #{inception_dxlstm_forward.1} parent=11 // pred_region
          _
        $region24: #{inception_dxlstm_forward.1} parent=11 // pred_fallthru
          _
        // Predicated region
        $region25: #{inception_dxlstm_forward.1} parent=11 // pred_check
          %p196 = pneg %p125
        $region26: #{inception_dxlstm_forward.1} parent=11 // pred_check_branch
          %198 = sbr.rel (%p196) target = $region28
        $region27: #{inception_dxlstm_forward.1} parent=11 // pred_region
          _
        $region28: #{inception_dxlstm_forward.1} parent=11 // pred_fallthru
          _
        // Predicated region
        $region29: #{inception_dxlstm_forward.1} parent=11 // pred_check
          %p199 = pneg %p146
        $region30: #{inception_dxlstm_forward.1} parent=11 // pred_check_branch
          %201 = sbr.rel (%p199) target = $region32
        $region31: #{inception_dxlstm_forward.1} parent=11 // pred_region
          _
        $region32: #{inception_dxlstm_forward.1} parent=11 // pred_fallthru
          _
      $region12: #{inception_dxlstm_forward.1} parent=5 // pred_fallthru
        _
      %p202 = scmp.lt.s32.totalorder %s15, 2
      // Predicated region
      $region33: #{inception_dxlstm_forward.1} parent=5 // pred_check
        %p203 = pneg %p202
      $region34: #{inception_dxlstm_forward.1} parent=5 // pred_check_branch
        %205 = sbr.rel (%p203) target = $region36
      $region35: #{inception_dxlstm_forward.1} parent=5 // pred_region
        // Predicated region
        $region37: #{inception_dxlstm_forward.1} parent=35 // pred_check
          %p206 = pneg %p35
        $region38: #{inception_dxlstm_forward.1} parent=35 // pred_check_branch
          %208 = sbr.rel (%p206) target = $region40
        $region39: #{inception_dxlstm_forward.1} parent=35 // pred_region
          %p209 = scmp.lt.s32.totalorder %s15, 1
          %s210 = scalar_select %p209, %s15, 1
          %s211 = smul.addr %s210, 8
          %s212 = scalar_lea.vmem %s0, %s211
        $region40: #{inception_dxlstm_forward.1} parent=35 // pred_fallthru
          _
      $region36: #{inception_dxlstm_forward.1} parent=5 // pred_fallthru
        _
      %p213 = scmp.le.s32.totalorder 1, %s15
      %p214 = scmp.lt.s32.totalorder %s15, 3
      %p215 = pnand %p213, %p214
      %p216 = pneg %p215
      // Predicated region
      $region41: #{inception_dxlstm_forward.1} parent=5 // pred_check
        _
      $region42: #{inception_dxlstm_forward.1} parent=5 // pred_check_branch
        %218 = sbr.rel (%p215) target = $region44
      $region43: #{inception_dxlstm_forward.1} parent=5 // pred_region
        %s219 = ssub.s32 %s15, 1
        %p220 = scmp.lt.s32.totalorder %s20, 1
        %s221 = scalar_select %p220, %s20, 1
        %s222 = smul.addr %s221, 8
        %s223 = scalar_lea.vmem %s0, %s222
        %p224 = pneg %p41
        %p225 = pneg %p38
        %p226 = pneg %p62
        %p227 = pneg %p59
        %p228 = pneg %p83
        %p229 = pneg %p80
        %p230 = pneg %p104
        %p231 = pneg %p101
        %p232 = pneg %p125
        %p233 = pneg %p122
        %p234 = pneg %p146
        %p235 = pneg %p143
        %p236 = pneg %p172
        %p237 = pneg %p169
        %s238 = sand.u32 %s159, 1
        %s239 = scalar_lea.sflag [#allocation4], %s238
        %s240 = sand.u32 %s159, 1
        %s241 = smul.addr %s240, 8
        %s242 = scalar_lea.vmem [#allocation3], %s241
        %p243 = scmp.lt.s32.totalorder %s20, 1
        %s244 = scalar_select %p243, %s20, 1
        %s245 = smul.addr %s244, 8
        %s246 = scalar_lea.vmem %s0, %s245
        %v247 = vld [vmem:[%s246] sm:$0xff]
        %v248 = vld [vmem:[%s1] sm:$0xff]
        %v249 = vld [vmem:[%s1 + $0x8] sm:$0xff]
        %v250 = vld [vmem:[%s1 + $0x10] sm:$0xff]
        %v251 = vld [vmem:[%s1 + $0x18] sm:$0xf]
        %v252 = vld [vmem:[%s2] sm:$0x1]
        %v254 = vlaneseq
        %v255 = vshrl.u32 %v254, 7
        %v256 = vsub.s32 0, %v255
        %v257 = vrot.slane %v252, %v256
        %vm259 = vcmask 228352
        %v261 = vsel %vm259, %v247, 0
        %vm263 = vcmask 1043456
        %v265 = vsel %vm263, %v251, 0
        %267 = vmatprep.subr.mxu0 0.0
        %268 = vmatpush1.msra.mxu0 %v248
        %269 = vmatprep.subr.mxu0 0.0
        %270 = vmatpush1.msra.mxu0 %v249
        %271 = vmatprep.subr.mxu0 0.0
        %272 = vmatpush1.msra.mxu0 %v250
        %273 = vmatprep.subr.mxu0 0.0
        %274 = vmatpush1.msra.mxu0 %v265
        %275 = vmatprep.subr.mxu0 0.0
        %276 = vmatpush1.msra.mxu0 0.0
        %277 = vmatprep.subr.mxu0 0.0
        %278 = vmatpush1.msra.mxu0 0.0
        %279 = vmatprep.subr.mxu0 0.0
        %280 = vmatpush1.msra.mxu0 0.0
        %281 = vmatprep.subr.mxu0 0.0
        %282 = vmatpush1.msra.mxu0 0.0
        %283 = vmatprep.subr.mxu0 0.0
        %284 = vmatpush1.msra.mxu0 0.0
        %285 = vmatprep.subr.mxu0 0.0
        %286 = vmatpush1.msra.mxu0 0.0
        %287 = vmatprep.subr.mxu0 0.0
        %288 = vmatpush1.msra.mxu0 0.0
        %289 = vmatprep.subr.mxu0 0.0
        %290 = vmatpush1.msra.mxu0 0.0
        %291 = vmatprep.subr.mxu0 0.0
        %292 = vmatpush1.msra.mxu0 0.0
        %293 = vmatprep.subr.mxu0 0.0
        %294 = vmatpush1.msra.mxu0 0.0
        %295 = vmatprep.subr.mxu0 0.0
        %296 = vmatpush1.msra.mxu0 0.0
        %297 = vmatprep.subr.mxu0 0.0
        %298 = vmatpush1.msra.mxu0 0.0
        %299 = vmatprep.subr.mxu0 0.0
        %300 = vmatpush1.msra.mxu0 0.0
        %301 = vmatprep.subr.mxu0 0.0
        %302 = vmatpush1.msra.mxu0 0.0
        %303 = vmatprep.subr.mxu0 0.0
        %304 = vmatpush1.msra.mxu0 0.0
        %305 = vmatprep.subr.mxu0 0.0
        %306 = vmatpush1.msra.mxu0 0.0
        %307 = vmatprep.subr.mxu0 0.0
        %308 = vmatpush1.msra.mxu0 0.0
        %309 = vmatprep.subr.mxu0 0.0
        %310 = vmatpush1.msra.mxu0 0.0
        %311 = vmatprep.subr.mxu0 0.0
        %312 = vmatpush1.msra.mxu0 0.0
        %313 = vmatprep.subr.mxu0 0.0
        %314 = vmatpush1.msra.mxu0 0.0
        %315 = vmatprep.subr.mxu0 0.0
        %316 = vmatpush1.msra.mxu0 0.0
        %317 = vmatprep.subr.mxu0 0.0
        %318 = vmatpush1.msra.mxu0 0.0
        %319 = vmatprep.subr.mxu0 0.0
        %320 = vmatpush1.msra.mxu0 0.0
        %321 = vmatprep.subr.mxu0 0.0
        %322 = vmatpush1.msra.mxu0 0.0
        %323 = vmatprep.subr.mxu0 0.0
        %324 = vmatpush1.msra.mxu0 0.0
        %325 = vmatprep.subr.mxu0 0.0
        %326 = vmatpush1.msra.mxu0 0.0
        %327 = vmatprep.subr.mxu0 0.0
        %328 = vmatpush1.msra.mxu0 0.0
        %329 = vmatprep.subr.mxu0 0.0
        %330 = vmatpush1.msra.mxu0 0.0
        %331 = vmatprep.mubr.f32.mxu0 0.0
        %332 = vmatmul.mubr.f32.gmra.mrb[0].mxu0 %v261
        %v333 = vpop.f32.mrb[0].mxu0
        %v334 = vadd.f32 %v257, %v333
        %v335 = vpop.f32.mrb[0].mxu0
        %336 = vdwg.mxu0
        %v337 = vmax.f32 %v334, 0.0
        %v338 = vld [vmem:[%s3] sm:$0xff]
        %v339 = vld [vmem:[%s3 + $0x8] sm:$0xff]
        %v340 = vld [vmem:[%s3 + $0x10] sm:$0xff]
        %v341 = vld [vmem:[%s3 + $0x18] sm:$0xff]
        %v342 = vld [vmem:[%s3 + $0x20] sm:$0xff]
        %v343 = vld [vmem:[%s3 + $0x28] sm:$0xff]
        %v344 = vld [vmem:[%s3 + $0x30] sm:$0xff]
        %v345 = vld [vmem:[%s3 + $0x38] sm:$0xff]
        %v346 = vld [vmem:[%s3 + $0x40] sm:$0xff]
        %v347 = vld [vmem:[%s3 + $0x48] sm:$0xff]
        %v348 = vld [vmem:[%s3 + $0x50] sm:$0xff]
        %v349 = vld [vmem:[%s3 + $0x58] sm:$0xff]
        %v350 = vld [vmem:[%s5] sm:$0x1]
        %v352 = vlaneseq
        %v353 = vshrl.u32 %v352, 7
        %v354 = vsub.s32 0, %v353
        %v355 = vrot.slane %v350, %v354
        %vm357 = vcmask 785408
        %v359 = vsel %vm357, %v337, 0
        %361 = vmatprep.subr.mxu0 0.0
        %362 = vmatpush1.msra.mxu0 %v338
        %363 = vmatprep.subr.mxu0 0.0
        %364 = vmatpush1.msra.mxu0 %v339
        %365 = vmatprep.subr.mxu0 0.0
        %366 = vmatpush1.msra.mxu0 %v340
        %367 = vmatprep.subr.mxu0 0.0
        %368 = vmatpush1.msra.mxu0 %v341
        %369 = vmatprep.subr.mxu0 0.0
        %370 = vmatpush1.msra.mxu0 %v342
        %371 = vmatprep.subr.mxu0 0.0
        %372 = vmatpush1.msra.mxu0 %v343
        %373 = vmatprep.subr.mxu0 0.0
        %374 = vmatpush1.msra.mxu0 %v344
        %375 = vmatprep.subr.mxu0 0.0
        %376 = vmatpush1.msra.mxu0 %v345
        %377 = vmatprep.subr.mxu0 0.0
        %378 = vmatpush1.msra.mxu0 %v346
        %379 = vmatprep.subr.mxu0 0.0
        %380 = vmatpush1.msra.mxu0 %v347
        %381 = vmatprep.subr.mxu0 0.0
        %382 = vmatpush1.msra.mxu0 %v348
        %383 = vmatprep.subr.mxu0 0.0
        %384 = vmatpush1.msra.mxu0 %v349
        %385 = vmatprep.subr.mxu0 0.0
        %386 = vmatpush1.msra.mxu0 0.0
        %387 = vmatprep.subr.mxu0 0.0
        %388 = vmatpush1.msra.mxu0 0.0
        %389 = vmatprep.subr.mxu0 0.0
        %390 = vmatpush1.msra.mxu0 0.0
        %391 = vmatprep.subr.mxu0 0.0
        %392 = vmatpush1.msra.mxu0 0.0
        %393 = vmatprep.subr.mxu0 0.0
        %394 = vmatpush1.msra.mxu0 0.0
        %395 = vmatprep.subr.mxu0 0.0
        %396 = vmatpush1.msra.mxu0 0.0
        %397 = vmatprep.subr.mxu0 0.0
        %398 = vmatpush1.msra.mxu0 0.0
        %399 = vmatprep.subr.mxu0 0.0
        %400 = vmatpush1.msra.mxu0 0.0
        %401 = vmatprep.subr.mxu0 0.0
        %402 = vmatpush1.msra.mxu0 0.0
        %403 = vmatprep.subr.mxu0 0.0
        %404 = vmatpush1.msra.mxu0 0.0
        %405 = vmatprep.subr.mxu0 0.0
        %406 = vmatpush1.msra.mxu0 0.0
        %407 = vmatprep.subr.mxu0 0.0
        %408 = vmatpush1.msra.mxu0 0.0
        %409 = vmatprep.subr.mxu0 0.0
        %410 = vmatpush1.msra.mxu0 0.0
        %411 = vmatprep.subr.mxu0 0.0
        %412 = vmatpush1.msra.mxu0 0.0
        %413 = vmatprep.subr.mxu0 0.0
        %414 = vmatpush1.msra.mxu0 0.0
        %415 = vmatprep.subr.mxu0 0.0
        %416 = vmatpush1.msra.mxu0 0.0
        %417 = vmatprep.subr.mxu0 0.0
        %418 = vmatpush1.msra.mxu0 0.0
        %419 = vmatprep.subr.mxu0 0.0
        %420 = vmatpush1.msra.mxu0 0.0
        %421 = vmatprep.subr.mxu0 0.0
        %422 = vmatpush1.msra.mxu0 0.0
        %423 = vmatprep.subr.mxu0 0.0
        %424 = vmatpush1.msra.mxu0 0.0
        %425 = vmatprep.mubr.f32.mxu0 0.0
        %426 = vmatmul.mubr.f32.gmra.mrb[0].mxu0 %v359
        %v427 = vpop.f32.mrb[0].mxu0
        %v428 = vadd.f32 %v355, %v427
        %v429 = vpop.f32.mrb[0].mxu0
        %430 = vdwg.mxu0
        %431 = vst [vmem:[#allocation2] sm:$0xff] %v428
        %v432 = vlaneseq
        %v433 = vand.u32 %v432, 127
        %vm434 = vcmp.lt.s32.totalorder %v433, 96
        %v435 = vld [vmem:[%s4] sm:$0xff]
        %v436 = vld [vmem:[%s4 + $0x8] sm:$0xff]
        %v437 = vld [vmem:[%s4 + $0x10] sm:$0xff]
        %v438 = vld [vmem:[%s4 + $0x18] sm:$0xff]
        %v439 = vld [vmem:[#allocation2] sm:$0x1]
        %vm440 = vcmask 261120
        %v442 = vsel %vm440, 0.0, 0
        %444 = vmatprep.subr.mxu0 0.0
        %445 = vmatpush1.msra.mxu0 %v435
        %446 = vmatprep.subr.mxu0 0.0
        %447 = vmatpush1.msra.mxu0 %v436
        %448 = vmatprep.subr.mxu0 0.0
        %449 = vmatpush1.msra.mxu0 %v437
        %450 = vmatprep.subr.mxu0 0.0
        %451 = vmatpush1.msra.mxu0 %v438
        %452 = vmatprep.subr.mxu0 0.0
        %453 = vmatpush1.msra.mxu0 0.0
        %454 = vmatprep.subr.mxu0 0.0
        %455 = vmatpush1.msra.mxu0 0.0
        %456 = vmatprep.subr.mxu0 0.0
        %457 = vmatpush1.msra.mxu0 0.0
        %458 = vmatprep.subr.mxu0 0.0
        %459 = vmatpush1.msra.mxu0 0.0
        %460 = vmatprep.subr.mxu0 0.0
        %461 = vmatpush1.msra.mxu0 0.0
        %462 = vmatprep.subr.mxu0 0.0
        %463 = vmatpush1.msra.mxu0 0.0
        %464 = vmatprep.subr.mxu0 0.0
        %465 = vmatpush1.msra.mxu0 0.0
        %466 = vmatprep.subr.mxu0 0.0
        %467 = vmatpush1.msra.mxu0 0.0
        %468 = vmatprep.subr.mxu0 0.0
        %469 = vmatpush1.msra.mxu0 0.0
        %470 = vmatprep.subr.mxu0 0.0
        %471 = vmatpush1.msra.mxu0 0.0
        %472 = vmatprep.subr.mxu0 0.0
        %473 = vmatpush1.msra.mxu0 0.0
        %474 = vmatprep.subr.mxu0 0.0
        %475 = vmatpush1.msra.mxu0 0.0
        %476 = vmatprep.subr.mxu0 0.0
        %477 = vmatpush1.msra.mxu0 0.0
        %478 = vmatprep.subr.mxu0 0.0
        %479 = vmatpush1.msra.mxu0 0.0
        %480 = vmatprep.subr.mxu0 0.0
        %481 = vmatpush1.msra.mxu0 0.0
        %482 = vmatprep.subr.mxu0 0.0
        %483 = vmatpush1.msra.mxu0 0.0
        %484 = vmatprep.subr.mxu0 0.0
        %485 = vmatpush1.msra.mxu0 0.0
        %486 = vmatprep.subr.mxu0 0.0
        %487 = vmatpush1.msra.mxu0 0.0
        %488 = vmatprep.subr.mxu0 0.0
        %489 = vmatpush1.msra.mxu0 0.0
        %490 = vmatprep.subr.mxu0 0.0
        %491 = vmatpush1.msra.mxu0 0.0
        %492 = vmatprep.subr.mxu0 0.0
        %493 = vmatpush1.msra.mxu0 0.0
        %494 = vmatprep.subr.mxu0 0.0
        %495 = vmatpush1.msra.mxu0 0.0
        %496 = vmatprep.subr.mxu0 0.0
        %497 = vmatpush1.msra.mxu0 0.0
        %498 = vmatprep.subr.mxu0 0.0
        %499 = vmatpush1.msra.mxu0 0.0
        %500 = vmatprep.subr.mxu0 0.0
        %501 = vmatpush1.msra.mxu0 0.0
        %502 = vmatprep.subr.mxu0 0.0
        %503 = vmatpush1.msra.mxu0 0.0
        %504 = vmatprep.subr.mxu0 0.0
        %505 = vmatpush1.msra.mxu0 0.0
        %506 = vmatprep.subr.mxu0 0.0
        %507 = vmatpush1.msra.mxu0 0.0
        %508 = vmatprep.mubr.f32.mxu0 0.0
        %509 = vmatmul.mubr.f32.gmra.mrb[0].mxu0 %v442
        %v510 = vpop.f32.mrb[0].mxu0
        %v511 = vadd.f32 0.0, %v510
        %v512 = vpop.f32.mrb[0].mxu0
        %513 = vdwg.mxu0
        %v514 = vadd.f32 %v439, %v511
        %v515 = vxor.u32 %v514, 2147483648
        %v516 = vmul.f32 %v515, 1.442695
        %v517 = vpow.pop %v516
        %v518 = vadd.f32 %v517, 1.0
        %v519 = vrcp.pop %v518
        %v520 = vmul.f32 1.0, %v519
        %v521 = vtanh.pop %v514
        %v522 = vsel %vm434, %v520, %v521
        %v523 = vmul.f32 %v522, 0.0
        %525 = vrot.lane.b32.xlu0 %v522, 32
        %v526 = vpop.permute.xlu0 %525
        %v528 = vmul.f32 %v522, %v526
        %530 = vrot.lane.b32.xlu0 %v528, 32
        %v531 = vpop.permute.xlu0 %530
        %v533 = vadd.f32 %v523, %v531
        %v534 = vtanh.pop %v533
        %536 = vrot.lane.b32.xlu0 %v534, 32
        %v537 = vpop.permute.xlu0 %536
        %v539 = vmul.f32 %v522, %v537
        %s540 = sadd.s32 0, 1
        %s541 = scalar_lea.vmem [#allocation2], %s540
        %v542 = vld [vmem:[%s541] sm:$0x1]
        %544 = vrot.lane.b32.xlu0 %v539, 64
        %v545 = vpop.permute.xlu0 %544
        %v546 = vsel %vm440, %v545, 0
        %548 = vmatprep.subr.mxu0 0.0
        %549 = vmatpush1.msra.mxu0 %v435
        %550 = vmatprep.subr.mxu0 0.0
        %551 = vmatpush1.msra.mxu0 %v436
        %552 = vmatprep.subr.mxu0 0.0
        %553 = vmatpush1.msra.mxu0 %v437
        %554 = vmatprep.subr.mxu0 0.0
        %555 = vmatpush1.msra.mxu0 %v438
        %556 = vmatprep.subr.mxu0 0.0
        %557 = vmatpush1.msra.mxu0 0.0
        %558 = vmatprep.subr.mxu0 0.0
        %559 = vmatpush1.msra.mxu0 0.0
        %560 = vmatprep.subr.mxu0 0.0
        %561 = vmatpush1.msra.mxu0 0.0
        %562 = vmatprep.subr.mxu0 0.0
        %563 = vmatpush1.msra.mxu0 0.0
        %564 = vmatprep.subr.mxu0 0.0
        %565 = vmatpush1.msra.mxu0 0.0
        %566 = vmatprep.subr.mxu0 0.0
        %567 = vmatpush1.msra.mxu0 0.0
        %568 = vmatprep.subr.mxu0 0.0
        %569 = vmatpush1.msra.mxu0 0.0
        %570 = vmatprep.subr.mxu0 0.0
        %571 = vmatpush1.msra.mxu0 0.0
        %572 = vmatprep.subr.mxu0 0.0
        %573 = vmatpush1.msra.mxu0 0.0
        %574 = vmatprep.subr.mxu0 0.0
        %575 = vmatpush1.msra.mxu0 0.0
        %576 = vmatprep.subr.mxu0 0.0
        %577 = vmatpush1.msra.mxu0 0.0
        %578 = vmatprep.subr.mxu0 0.0
        %579 = vmatpush1.msra.mxu0 0.0
        %580 = vmatprep.subr.mxu0 0.0
        %581 = vmatpush1.msra.mxu0 0.0
        %582 = vmatprep.subr.mxu0 0.0
        %583 = vmatpush1.msra.mxu0 0.0
        %584 = vmatprep.subr.mxu0 0.0
        %585 = vmatpush1.msra.mxu0 0.0
        %586 = vmatprep.subr.mxu0 0.0
        %587 = vmatpush1.msra.mxu0 0.0
        %588 = vmatprep.subr.mxu0 0.0
        %589 = vmatpush1.msra.mxu0 0.0
        %590 = vmatprep.subr.mxu0 0.0
        %591 = vmatpush1.msra.mxu0 0.0
        %592 = vmatprep.subr.mxu0 0.0
        %593 = vmatpush1.msra.mxu0 0.0
        %594 = vmatprep.subr.mxu0 0.0
        %595 = vmatpush1.msra.mxu0 0.0
        %596 = vmatprep.subr.mxu0 0.0
        %597 = vmatpush1.msra.mxu0 0.0
        %598 = vmatprep.subr.mxu0 0.0
        %599 = vmatpush1.msra.mxu0 0.0
        %600 = vmatprep.subr.mxu0 0.0
        %601 = vmatpush1.msra.mxu0 0.0
        %602 = vmatprep.subr.mxu0 0.0
        %603 = vmatpush1.msra.mxu0 0.0
        %604 = vmatprep.subr.mxu0 0.0
        %605 = vmatpush1.msra.mxu0 0.0
        %606 = vmatprep.subr.mxu0 0.0
        %607 = vmatpush1.msra.mxu0 0.0
        %608 = vmatprep.subr.mxu0 0.0
        %609 = vmatpush1.msra.mxu0 0.0
        %610 = vmatprep.subr.mxu0 0.0
        %611 = vmatpush1.msra.mxu0 0.0
        %612 = vmatprep.mubr.f32.mxu0 0.0
        %613 = vmatmul.mubr.f32.gmra.mrb[0].mxu0 %v546
        %v614 = vpop.f32.mrb[0].mxu0
        %v615 = vadd.f32 0.0, %v614
        %v616 = vpop.f32.mrb[0].mxu0
        %617 = vdwg.mxu0
        %v618 = vadd.f32 %v542, %v615
        %v619 = vxor.u32 %v618, 2147483648
        %v620 = vmul.f32 %v619, 1.442695
        %v621 = vpow.pop %v620
        %v622 = vadd.f32 %v621, 1.0
        %v623 = vrcp.pop %v622
        %v624 = vmul.f32 1.0, %v623
        %v625 = vtanh.pop %v618
        %v626 = vsel %vm434, %v624, %v625
        %v627 = vmul.f32 %v626, %v533
        %629 = vrot.lane.b32.xlu0 %v626, 32
        %v630 = vpop.permute.xlu0 %629
        %v632 = vmul.f32 %v626, %v630
        %634 = vrot.lane.b32.xlu0 %v632, 32
        %v635 = vpop.permute.xlu0 %634
        %v637 = vadd.f32 %v627, %v635
        %v638 = vtanh.pop %v637
        %640 = vrot.lane.b32.xlu0 %v638, 32
        %v641 = vpop.permute.xlu0 %640
        %v643 = vmul.f32 %v626, %v641
        %s644 = sadd.s32 0, 2
        %s645 = scalar_lea.vmem [#allocation2], %s644
        %v646 = vld [vmem:[%s645] sm:$0x1]
        %648 = vrot.lane.b32.xlu0 %v643, 64
        %v649 = vpop.permute.xlu0 %648
        %v650 = vsel %vm440, %v649, 0
        %652 = vmatprep.subr.mxu0 0.0
        %653 = vmatpush1.msra.mxu0 %v435
        %654 = vmatprep.subr.mxu0 0.0
        %655 = vmatpush1.msra.mxu0 %v436
        %656 = vmatprep.subr.mxu0 0.0
        %657 = vmatpush1.msra.mxu0 %v437
        %658 = vmatprep.subr.mxu0 0.0
        %659 = vmatpush1.msra.mxu0 %v438
        %660 = vmatprep.subr.mxu0 0.0
        %661 = vmatpush1.msra.mxu0 0.0
        %662 = vmatprep.subr.mxu0 0.0
        %663 = vmatpush1.msra.mxu0 0.0
        %664 = vmatprep.subr.mxu0 0.0
        %665 = vmatpush1.msra.mxu0 0.0
        %666 = vmatprep.subr.mxu0 0.0
        %667 = vmatpush1.msra.mxu0 0.0
        %668 = vmatprep.subr.mxu0 0.0
        %669 = vmatpush1.msra.mxu0 0.0
        %670 = vmatprep.subr.mxu0 0.0
        %671 = vmatpush1.msra.mxu0 0.0
        %672 = vmatprep.subr.mxu0 0.0
        %673 = vmatpush1.msra.mxu0 0.0
        %674 = vmatprep.subr.mxu0 0.0
        %675 = vmatpush1.msra.mxu0 0.0
        %676 = vmatprep.subr.mxu0 0.0
        %677 = vmatpush1.msra.mxu0 0.0
        %678 = vmatprep.subr.mxu0 0.0
        %679 = vmatpush1.msra.mxu0 0.0
        %680 = vmatprep.subr.mxu0 0.0
        %681 = vmatpush1.msra.mxu0 0.0
        %682 = vmatprep.subr.mxu0 0.0
        %683 = vmatpush1.msra.mxu0 0.0
        %684 = vmatprep.subr.mxu0 0.0
        %685 = vmatpush1.msra.mxu0 0.0
        %686 = vmatprep.subr.mxu0 0.0
        %687 = vmatpush1.msra.mxu0 0.0
        %688 = vmatprep.subr.mxu0 0.0
        %689 = vmatpush1.msra.mxu0 0.0
        %690 = vmatprep.subr.mxu0 0.0
        %691 = vmatpush1.msra.mxu0 0.0
        %692 = vmatprep.subr.mxu0 0.0
        %693 = vmatpush1.msra.mxu0 0.0
        %694 = vmatprep.subr.mxu0 0.0
        %695 = vmatpush1.msra.mxu0 0.0
        %696 = vmatprep.subr.mxu0 0.0
        %697 = vmatpush1.msra.mxu0 0.0
        %698 = vmatprep.subr.mxu0 0.0
        %699 = vmatpush1.msra.mxu0 0.0
        %700 = vmatprep.subr.mxu0 0.0
        %701 = vmatpush1.msra.mxu0 0.0
        %702 = vmatprep.subr.mxu0 0.0
        %703 = vmatpush1.msra.mxu0 0.0
        %704 = vmatprep.subr.mxu0 0.0
        %705 = vmatpush1.msra.mxu0 0.0
        %706 = vmatprep.subr.mxu0 0.0
        %707 = vmatpush1.msra.mxu0 0.0
        %708 = vmatprep.subr.mxu0 0.0
        %709 = vmatpush1.msra.mxu0 0.0
        %710 = vmatprep.subr.mxu0 0.0
        %711 = vmatpush1.msra.mxu0 0.0
        %712 = vmatprep.subr.mxu0 0.0
        %713 = vmatpush1.msra.mxu0 0.0
        %714 = vmatprep.subr.mxu0 0.0
        %715 = vmatpush1.msra.mxu0 0.0
        %716 = vmatprep.mubr.f32.mxu0 0.0
        %717 = vmatmul.mubr.f32.gmra.mrb[0].mxu0 %v650
        %v718 = vpop.f32.mrb[0].mxu0
        %v719 = vadd.f32 0.0, %v718
        %v720 = vpop.f32.mrb[0].mxu0
        %721 = vdwg.mxu0
        %v722 = vadd.f32 %v646, %v719
        %v723 = vxor.u32 %v722, 2147483648
        %v724 = vmul.f32 %v723, 1.442695
        %v725 = vpow.pop %v724
        %v726 = vadd.f32 %v725, 1.0
        %v727 = vrcp.pop %v726
        %v728 = vmul.f32 1.0, %v727
        %v729 = vtanh.pop %v722
        %v730 = vsel %vm434, %v728, %v729
        %v731 = vmul.f32 %v730, %v637
        %733 = vrot.lane.b32.xlu0 %v730, 32
        %v734 = vpop.permute.xlu0 %733
        %v736 = vmul.f32 %v730, %v734
        %738 = vrot.lane.b32.xlu0 %v736, 32
        %v739 = vpop.permute.xlu0 %738
        %v741 = vadd.f32 %v731, %v739
        %v742 = vtanh.pop %v741
        %744 = vrot.lane.b32.xlu0 %v742, 32
        %v745 = vpop.permute.xlu0 %744
        %v747 = vmul.f32 %v730, %v745
        %s748 = sadd.s32 0, 3
        %s749 = scalar_lea.vmem [#allocation2], %s748
        %v750 = vld [vmem:[%s749] sm:$0x1]
        %752 = vrot.lane.b32.xlu0 %v747, 64
        %v753 = vpop.permute.xlu0 %752
        %v754 = vsel %vm440, %v753, 0
        %756 = vmatprep.subr.mxu0 0.0
        %757 = vmatpush1.msra.mxu0 %v435
        %758 = vmatprep.subr.mxu0 0.0
        %759 = vmatpush1.msra.mxu0 %v436
        %760 = vmatprep.subr.mxu0 0.0
        %761 = vmatpush1.msra.mxu0 %v437
        %762 = vmatprep.subr.mxu0 0.0
        %763 = vmatpush1.msra.mxu0 %v438
        %764 = vmatprep.subr.mxu0 0.0
        %765 = vmatpush1.msra.mxu0 0.0
        %766 = vmatprep.subr.mxu0 0.0
        %767 = vmatpush1.msra.mxu0 0.0
        %768 = vmatprep.subr.mxu0 0.0
        %769 = vmatpush1.msra.mxu0 0.0
        %770 = vmatprep.subr.mxu0 0.0
        %771 = vmatpush1.msra.mxu0 0.0
        %772 = vmatprep.subr.mxu0 0.0
        %773 = vmatpush1.msra.mxu0 0.0
        %774 = vmatprep.subr.mxu0 0.0
        %775 = vmatpush1.msra.mxu0 0.0
        %776 = vmatprep.subr.mxu0 0.0
        %777 = vmatpush1.msra.mxu0 0.0
        %778 = vmatprep.subr.mxu0 0.0
        %779 = vmatpush1.msra.mxu0 0.0
        %780 = vmatprep.subr.mxu0 0.0
        %781 = vmatpush1.msra.mxu0 0.0
        %782 = vmatprep.subr.mxu0 0.0
        %783 = vmatpush1.msra.mxu0 0.0
        %784 = vmatprep.subr.mxu0 0.0
        %785 = vmatpush1.msra.mxu0 0.0
        %786 = vmatprep.subr.mxu0 0.0
        %787 = vmatpush1.msra.mxu0 0.0
        %788 = vmatprep.subr.mxu0 0.0
        %789 = vmatpush1.msra.mxu0 0.0
        %790 = vmatprep.subr.mxu0 0.0
        %791 = vmatpush1.msra.mxu0 0.0
        %792 = vmatprep.subr.mxu0 0.0
        %793 = vmatpush1.msra.mxu0 0.0
        %794 = vmatprep.subr.mxu0 0.0
        %795 = vmatpush1.msra.mxu0 0.0
        %796 = vmatprep.subr.mxu0 0.0
        %797 = vmatpush1.msra.mxu0 0.0
        %798 = vmatprep.subr.mxu0 0.0
        %799 = vmatpush1.msra.mxu0 0.0
        %800 = vmatprep.subr.mxu0 0.0
        %801 = vmatpush1.msra.mxu0 0.0
        %802 = vmatprep.subr.mxu0 0.0
        %803 = vmatpush1.msra.mxu0 0.0
        %804 = vmatprep.subr.mxu0 0.0
        %805 = vmatpush1.msra.mxu0 0.0
        %806 = vmatprep.subr.mxu0 0.0
        %807 = vmatpush1.msra.mxu0 0.0
        %808 = vmatprep.subr.mxu0 0.0
        %809 = vmatpush1.msra.mxu0 0.0
        %810 = vmatprep.subr.mxu0 0.0
        %811 = vmatpush1.msra.mxu0 0.0
        %812 = vmatprep.subr.mxu0 0.0
        %813 = vmatpush1.msra.mxu0 0.0
        %814 = vmatprep.subr.mxu0 0.0
        %815 = vmatpush1.msra.mxu0 0.0
        %816 = vmatprep.subr.mxu0 0.0
        %817 = vmatpush1.msra.mxu0 0.0
        %818 = vmatprep.subr.mxu0 0.0
        %819 = vmatpush1.msra.mxu0 0.0
        %820 = vmatprep.mubr.f32.mxu0 0.0
        %821 = vmatmul.mubr.f32.gmra.mrb[0].mxu0 %v754
        %v822 = vpop.f32.mrb[0].mxu0
        %v823 = vadd.f32 0.0, %v822
        %v824 = vpop.f32.mrb[0].mxu0
        %825 = vdwg.mxu0
        %v826 = vadd.f32 %v750, %v823
        %v827 = vxor.u32 %v826, 2147483648
        %v828 = vmul.f32 %v827, 1.442695
        %v829 = vpow.pop %v828
        %v830 = vadd.f32 %v829, 1.0
        %v831 = vrcp.pop %v830
        %v832 = vmul.f32 1.0, %v831
        %v833 = vtanh.pop %v826
        %v834 = vsel %vm434, %v832, %v833
        %v835 = vmul.f32 %v834, %v741
        %837 = vrot.lane.b32.xlu0 %v834, 32
        %v838 = vpop.permute.xlu0 %837
        %v840 = vmul.f32 %v834, %v838
        %842 = vrot.lane.b32.xlu0 %v840, 32
        %v843 = vpop.permute.xlu0 %842
        %v845 = vadd.f32 %v835, %v843
        %v846 = vtanh.pop %v845
        %848 = vrot.lane.b32.xlu0 %v846, 32
        %v849 = vpop.permute.xlu0 %848
        %v851 = vmul.f32 %v834, %v849
        %s852 = sadd.s32 0, 4
        %s853 = scalar_lea.vmem [#allocation2], %s852
        %v854 = vld [vmem:[%s853] sm:$0x1]
        %856 = vrot.lane.b32.xlu0 %v851, 64
        %v857 = vpop.permute.xlu0 %856
        %v858 = vsel %vm440, %v857, 0
        %860 = vmatprep.subr.mxu0 0.0
        %861 = vmatpush1.msra.mxu0 %v435
        %862 = vmatprep.subr.mxu0 0.0
        %863 = vmatpush1.msra.mxu0 %v436
        %864 = vmatprep.subr.mxu0 0.0
        %865 = vmatpush1.msra.mxu0 %v437
        %866 = vmatprep.subr.mxu0 0.0
        %867 = vmatpush1.msra.mxu0 %v438
        %868 = vmatprep.subr.mxu0 0.0
        %869 = vmatpush1.msra.mxu0 0.0
        %870 = vmatprep.subr.mxu0 0.0
        %871 = vmatpush1.msra.mxu0 0.0
        %872 = vmatprep.subr.mxu0 0.0
        %873 = vmatpush1.msra.mxu0 0.0
        %874 = vmatprep.subr.mxu0 0.0
        %875 = vmatpush1.msra.mxu0 0.0
        %876 = vmatprep.subr.mxu0 0.0
        %877 = vmatpush1.msra.mxu0 0.0
        %878 = vmatprep.subr.mxu0 0.0
        %879 = vmatpush1.msra.mxu0 0.0
        %880 = vmatprep.subr.mxu0 0.0
        %881 = vmatpush1.msra.mxu0 0.0
        %882 = vmatprep.subr.mxu0 0.0
        %883 = vmatpush1.msra.mxu0 0.0
        %884 = vmatprep.subr.mxu0 0.0
        %885 = vmatpush1.msra.mxu0 0.0
        %886 = vmatprep.subr.mxu0 0.0
        %887 = vmatpush1.msra.mxu0 0.0
        %888 = vmatprep.subr.mxu0 0.0
        %889 = vmatpush1.msra.mxu0 0.0
        %890 = vmatprep.subr.mxu0 0.0
        %891 = vmatpush1.msra.mxu0 0.0
        %892 = vmatprep.subr.mxu0 0.0
        %893 = vmatpush1.msra.mxu0 0.0
        %894 = vmatprep.subr.mxu0 0.0
        %895 = vmatpush1.msra.mxu0 0.0
        %896 = vmatprep.subr.mxu0 0.0
        %897 = vmatpush1.msra.mxu0 0.0
        %898 = vmatprep.subr.mxu0 0.0
        %899 = vmatpush1.msra.mxu0 0.0
        %900 = vmatprep.subr.mxu0 0.0
        %901 = vmatpush1.msra.mxu0 0.0
        %902 = vmatprep.subr.mxu0 0.0
        %903 = vmatpush1.msra.mxu0 0.0
        %904 = vmatprep.subr.mxu0 0.0
        %905 = vmatpush1.msra.mxu0 0.0
        %906 = vmatprep.subr.mxu0 0.0
        %907 = vmatpush1.msra.mxu0 0.0
        %908 = vmatprep.subr.mxu0 0.0
        %909 = vmatpush1.msra.mxu0 0.0
        %910 = vmatprep.subr.mxu0 0.0
        %911 = vmatpush1.msra.mxu0 0.0
        %912 = vmatprep.subr.mxu0 0.0
        %913 = vmatpush1.msra.mxu0 0.0
        %914 = vmatprep.subr.mxu0 0.0
        %915 = vmatpush1.msra.mxu0 0.0
        %916 = vmatprep.subr.mxu0 0.0
        %917 = vmatpush1.msra.mxu0 0.0
        %918 = vmatprep.subr.mxu0 0.0
        %919 = vmatpush1.msra.mxu0 0.0
        %920 = vmatprep.subr.mxu0 0.0
        %921 = vmatpush1.msra.mxu0 0.0
        %922 = vmatprep.subr.mxu0 0.0
        %923 = vmatpush1.msra.mxu0 0.0
        %924 = vmatprep.mubr.f32.mxu0 0.0
        %925 = vmatmul.mubr.f32.gmra.mrb[0].mxu0 %v858
        %v926 = vpop.f32.mrb[0].mxu0
        %v927 = vadd.f32 0.0, %v926
        %v928 = vpop.f32.mrb[0].mxu0
        %929 = vdwg.mxu0
        %v930 = vadd.f32 %v854, %v927
        %v931 = vxor.u32 %v930, 2147483648
        %v932 = vmul.f32 %v931, 1.442695
        %v933 = vpow.pop %v932
        %v934 = vadd.f32 %v933, 1.0
        %v935 = vrcp.pop %v934
        %v936 = vmul.f32 1.0, %v935
        %v937 = vtanh.pop %v930
        %v938 = vsel %vm434, %v936, %v937
        %v939 = vmul.f32 %v938, %v845
        %941 = vrot.lane.b32.xlu0 %v938, 32
        %v942 = vpop.permute.xlu0 %941
        %v944 = vmul.f32 %v938, %v942
        %946 = vrot.lane.b32.xlu0 %v944, 32
        %v947 = vpop.permute.xlu0 %946
        %v949 = vadd.f32 %v939, %v947
        %v950 = vtanh.pop %v949
        %952 = vrot.lane.b32.xlu0 %v950, 32
        %v953 = vpop.permute.xlu0 %952
        %v955 = vmul.f32 %v938, %v953
        %s956 = sadd.s32 0, 5
        %s957 = scalar_lea.vmem [#allocation2], %s956
        %v958 = vld [vmem:[%s957] sm:$0x1]
        %960 = vrot.lane.b32.xlu0 %v955, 64
        %v961 = vpop.permute.xlu0 %960
        %v962 = vsel %vm440, %v961, 0
        %964 = vmatprep.subr.mxu0 0.0
        %965 = vmatpush1.msra.mxu0 %v435
        %966 = vmatprep.subr.mxu0 0.0
        %967 = vmatpush1.msra.mxu0 %v436
        %968 = vmatprep.subr.mxu0 0.0
        %969 = vmatpush1.msra.mxu0 %v437
        %970 = vmatprep.subr.mxu0 0.0
        %971 = vmatpush1.msra.mxu0 %v438
        %972 = vmatprep.subr.mxu0 0.0
        %973 = vmatpush1.msra.mxu0 0.0
        %974 = vmatprep.subr.mxu0 0.0
        %975 = vmatpush1.msra.mxu0 0.0
        %976 = vmatprep.subr.mxu0 0.0
        %977 = vmatpush1.msra.mxu0 0.0
        %978 = vmatprep.subr.mxu0 0.0
        %979 = vmatpush1.msra.mxu0 0.0
        %980 = vmatprep.subr.mxu0 0.0
        %981 = vmatpush1.msra.mxu0 0.0
        %982 = vmatprep.subr.mxu0 0.0
        %983 = vmatpush1.msra.mxu0 0.0
        %984 = vmatprep.subr.mxu0 0.0
        %985 = vmatpush1.msra.mxu0 0.0
        %986 = vmatprep.subr.mxu0 0.0
        %987 = vmatpush1.msra.mxu0 0.0
        %988 = vmatprep.subr.mxu0 0.0
        %989 = vmatpush1.msra.mxu0 0.0
        %990 = vmatprep.subr.mxu0 0.0
        %991 = vmatpush1.msra.mxu0 0.0
        %992 = vmatprep.subr.mxu0 0.0
        %993 = vmatpush1.msra.mxu0 0.0
        %994 = vmatprep.subr.mxu0 0.0
        %995 = vmatpush1.msra.mxu0 0.0
        %996 = vmatprep.subr.mxu0 0.0
        %997 = vmatpush1.msra.mxu0 0.0
        %998 = vmatprep.subr.mxu0 0.0
        %999 = vmatpush1.msra.mxu0 0.0
        %1000 = vmatprep.subr.mxu0 0.0
        %1001 = vmatpush1.msra.mxu0 0.0
        %1002 = vmatprep.subr.mxu0 0.0
        %1003 = vmatpush1.msra.mxu0 0.0
        %1004 = vmatprep.subr.mxu0 0.0
        %1005 = vmatpush1.msra.mxu0 0.0
        %1006 = vmatprep.subr.mxu0 0.0
        %1007 = vmatpush1.msra.mxu0 0.0
        %1008 = vmatprep.subr.mxu0 0.0
        %1009 = vmatpush1.msra.mxu0 0.0
        %1010 = vmatprep.subr.mxu0 0.0
        %1011 = vmatpush1.msra.mxu0 0.0
        %1012 = vmatprep.subr.mxu0 0.0
        %1013 = vmatpush1.msra.mxu0 0.0
        %1014 = vmatprep.subr.mxu0 0.0
        %1015 = vmatpush1.msra.mxu0 0.0
        %1016 = vmatprep.subr.mxu0 0.0
        %1017 = vmatpush1.msra.mxu0 0.0
        %1018 = vmatprep.subr.mxu0 0.0
        %1019 = vmatpush1.msra.mxu0 0.0
        %1020 = vmatprep.subr.mxu0 0.0
        %1021 = vmatpush1.msra.mxu0 0.0
        %1022 = vmatprep.subr.mxu0 0.0
        %1023 = vmatpush1.msra.mxu0 0.0
        %1024 = vmatprep.subr.mxu0 0.0
        %1025 = vmatpush1.msra.mxu0 0.0
        %1026 = vmatprep.subr.mxu0 0.0
        %1027 = vmatpush1.msra.mxu0 0.0
        %1028 = vmatprep.mubr.f32.mxu0 0.0
        %1029 = vmatmul.mubr.f32.gmra.mrb[0].mxu0 %v962
        %v1030 = vpop.f32.mrb[0].mxu0
        %v1031 = vadd.f32 0.0, %v1030
        %v1032 = vpop.f32.mrb[0].mxu0
        %1033 = vdwg.mxu0
        %v1034 = vadd.f32 %v958, %v1031
        %v1035 = vxor.u32 %v1034, 2147483648
        %v1036 = vmul.f32 %v1035, 1.442695
        %v1037 = vpow.pop %v1036
        %v1038 = vadd.f32 %v1037, 1.0
        %v1039 = vrcp.pop %v1038
        %v1040 = vmul.f32 1.0, %v1039
        %v1041 = vtanh.pop %v1034
        %v1042 = vsel %vm434, %v1040, %v1041
        %v1043 = vmul.f32 %v1042, %v949
        %1045 = vrot.lane.b32.xlu0 %v1042, 32
        %v1046 = vpop.permute.xlu0 %1045
        %v1048 = vmul.f32 %v1042, %v1046
        %1050 = vrot.lane.b32.xlu0 %v1048, 32
        %v1051 = vpop.permute.xlu0 %1050
        %v1053 = vadd.f32 %v1043, %v1051
        %v1054 = vtanh.pop %v1053
        %1056 = vrot.lane.b32.xlu0 %v1054, 32
        %v1057 = vpop.permute.xlu0 %1056
        %v1059 = vmul.f32 %v1042, %v1057
        %s1060 = sadd.s32 0, 6
        %s1061 = scalar_lea.vmem [#allocation2], %s1060
        %v1062 = vld [vmem:[%s1061] sm:$0x1]
        %1064 = vrot.lane.b32.xlu0 %v1059, 64
        %v1065 = vpop.permute.xlu0 %1064
        %v1066 = vsel %vm440, %v1065, 0
        %1068 = vmatprep.subr.mxu0 0.0
        %1069 = vmatpush1.msra.mxu0 %v435
        %1070 = vmatprep.subr.mxu0 0.0
        %1071 = vmatpush1.msra.mxu0 %v436
        %1072 = vmatprep.subr.mxu0 0.0
        %1073 = vmatpush1.msra.mxu0 %v437
        %1074 = vmatprep.subr.mxu0 0.0
        %1075 = vmatpush1.msra.mxu0 %v438
        %1076 = vmatprep.subr.mxu0 0.0
        %1077 = vmatpush1.msra.mxu0 0.0
        %1078 = vmatprep.subr.mxu0 0.0
        %1079 = vmatpush1.msra.mxu0 0.0
        %1080 = vmatprep.subr.mxu0 0.0
        %1081 = vmatpush1.msra.mxu0 0.0
        %1082 = vmatprep.subr.mxu0 0.0
        %1083 = vmatpush1.msra.mxu0 0.0
        %1084 = vmatprep.subr.mxu0 0.0
        %1085 = vmatpush1.msra.mxu0 0.0
        %1086 = vmatprep.subr.mxu0 0.0
        %1087 = vmatpush1.msra.mxu0 0.0
        %1088 = vmatprep.subr.mxu0 0.0
        %1089 = vmatpush1.msra.mxu0 0.0
        %1090 = vmatprep.subr.mxu0 0.0
        %1091 = vmatpush1.msra.mxu0 0.0
        %1092 = vmatprep.subr.mxu0 0.0
        %1093 = vmatpush1.msra.mxu0 0.0
        %1094 = vmatprep.subr.mxu0 0.0
        %1095 = vmatpush1.msra.mxu0 0.0
        %1096 = vmatprep.subr.mxu0 0.0
        %1097 = vmatpush1.msra.mxu0 0.0
        %1098 = vmatprep.subr.mxu0 0.0
        %1099 = vmatpush1.msra.mxu0 0.0
        %1100 = vmatprep.subr.mxu0 0.0
        %1101 = vmatpush1.msra.mxu0 0.0
        %1102 = vmatprep.subr.mxu0 0.0
        %1103 = vmatpush1.msra.mxu0 0.0
        %1104 = vmatprep.subr.mxu0 0.0
        %1105 = vmatpush1.msra.mxu0 0.0
        %1106 = vmatprep.subr.mxu0 0.0
        %1107 = vmatpush1.msra.mxu0 0.0
        %1108 = vmatprep.subr.mxu0 0.0
        %1109 = vmatpush1.msra.mxu0 0.0
        %1110 = vmatprep.subr.mxu0 0.0
        %1111 = vmatpush1.msra.mxu0 0.0
        %1112 = vmatprep.subr.mxu0 0.0
        %1113 = vmatpush1.msra.mxu0 0.0
        %1114 = vmatprep.subr.mxu0 0.0
        %1115 = vmatpush1.msra.mxu0 0.0
        %1116 = vmatprep.subr.mxu0 0.0
        %1117 = vmatpush1.msra.mxu0 0.0
        %1118 = vmatprep.subr.mxu0 0.0
        %1119 = vmatpush1.msra.mxu0 0.0
        %1120 = vmatprep.subr.mxu0 0.0
        %1121 = vmatpush1.msra.mxu0 0.0
        %1122 = vmatprep.subr.mxu0 0.0
        %1123 = vmatpush1.msra.mxu0 0.0
        %1124 = vmatprep.subr.mxu0 0.0
        %1125 = vmatpush1.msra.mxu0 0.0
        %1126 = vmatprep.subr.mxu0 0.0
        %1127 = vmatpush1.msra.mxu0 0.0
        %1128 = vmatprep.subr.mxu0 0.0
        %1129 = vmatpush1.msra.mxu0 0.0
        %1130 = vmatprep.subr.mxu0 0.0
        %1131 = vmatpush1.msra.mxu0 0.0
        %1132 = vmatprep.mubr.f32.mxu0 0.0
        %1133 = vmatmul.mubr.f32.gmra.mrb[0].mxu0 %v1066
        %v1134 = vpop.f32.mrb[0].mxu0
        %v1135 = vadd.f32 0.0, %v1134
        %v1136 = vpop.f32.mrb[0].mxu0
        %1137 = vdwg.mxu0
        %v1138 = vadd.f32 %v1062, %v1135
        %v1139 = vxor.u32 %v1138, 2147483648
        %v1140 = vmul.f32 %v1139, 1.442695
        %v1141 = vpow.pop %v1140
        %v1142 = vadd.f32 %v1141, 1.0
        %v1143 = vrcp.pop %v1142
        %v1144 = vmul.f32 1.0, %v1143
        %v1145 = vtanh.pop %v1138
        %v1146 = vsel %vm434, %v1144, %v1145
        %v1147 = vmul.f32 %v1146, %v1053
        %1149 = vrot.lane.b32.xlu0 %v1146, 32
        %v1150 = vpop.permute.xlu0 %1149
        %v1152 = vmul.f32 %v1146, %v1150
        %1154 = vrot.lane.b32.xlu0 %v1152, 32
        %v1155 = vpop.permute.xlu0 %1154
        %v1157 = vadd.f32 %v1147, %v1155
        %v1158 = vtanh.pop %v1157
        %1160 = vrot.lane.b32.xlu0 %v1158, 32
        %v1161 = vpop.permute.xlu0 %1160
        %v1163 = vmul.f32 %v1146, %v1161
        %s1164 = sadd.s32 0, 7
        %s1165 = scalar_lea.vmem [#allocation2], %s1164
        %v1166 = vld [vmem:[%s1165] sm:$0x1]
        %1168 = vrot.lane.b32.xlu0 %v1163, 64
        %v1169 = vpop.permute.xlu0 %1168
        %v1170 = vsel %vm440, %v1169, 0
        %1172 = vmatprep.subr.mxu0 0.0
        %1173 = vmatpush1.msra.mxu0 %v435
        %1174 = vmatprep.subr.mxu0 0.0
        %1175 = vmatpush1.msra.mxu0 %v436
        %1176 = vmatprep.subr.mxu0 0.0
        %1177 = vmatpush1.msra.mxu0 %v437
        %1178 = vmatprep.subr.mxu0 0.0
        %1179 = vmatpush1.msra.mxu0 %v438
        %1180 = vmatprep.subr.mxu0 0.0
        %1181 = vmatpush1.msra.mxu0 0.0
        %1182 = vmatprep.subr.mxu0 0.0
        %1183 = vmatpush1.msra.mxu0 0.0
        %1184 = vmatprep.subr.mxu0 0.0
        %1185 = vmatpush1.msra.mxu0 0.0
        %1186 = vmatprep.subr.mxu0 0.0
        %1187 = vmatpush1.msra.mxu0 0.0
        %1188 = vmatprep.subr.mxu0 0.0
        %1189 = vmatpush1.msra.mxu0 0.0
        %1190 = vmatprep.subr.mxu0 0.0
        %1191 = vmatpush1.msra.mxu0 0.0
        %1192 = vmatprep.subr.mxu0 0.0
        %1193 = vmatpush1.msra.mxu0 0.0
        %1194 = vmatprep.subr.mxu0 0.0
        %1195 = vmatpush1.msra.mxu0 0.0
        %1196 = vmatprep.subr.mxu0 0.0
        %1197 = vmatpush1.msra.mxu0 0.0
        %1198 = vmatprep.subr.mxu0 0.0
        %1199 = vmatpush1.msra.mxu0 0.0
        %1200 = vmatprep.subr.mxu0 0.0
        %1201 = vmatpush1.msra.mxu0 0.0
        %1202 = vmatprep.subr.mxu0 0.0
        %1203 = vmatpush1.msra.mxu0 0.0
        %1204 = vmatprep.subr.mxu0 0.0
        %1205 = vmatpush1.msra.mxu0 0.0
        %1206 = vmatprep.subr.mxu0 0.0
        %1207 = vmatpush1.msra.mxu0 0.0
        %1208 = vmatprep.subr.mxu0 0.0
        %1209 = vmatpush1.msra.mxu0 0.0
        %1210 = vmatprep.subr.mxu0 0.0
        %1211 = vmatpush1.msra.mxu0 0.0
        %1212 = vmatprep.subr.mxu0 0.0
        %1213 = vmatpush1.msra.mxu0 0.0
        %1214 = vmatprep.subr.mxu0 0.0
        %1215 = vmatpush1.msra.mxu0 0.0
        %1216 = vmatprep.subr.mxu0 0.0
        %1217 = vmatpush1.msra.mxu0 0.0
        %1218 = vmatprep.subr.mxu0 0.0
        %1219 = vmatpush1.msra.mxu0 0.0
        %1220 = vmatprep.subr.mxu0 0.0
        %1221 = vmatpush1.msra.mxu0 0.0
        %1222 = vmatprep.subr.mxu0 0.0
        %1223 = vmatpush1.msra.mxu0 0.0
        %1224 = vmatprep.subr.mxu0 0.0
        %1225 = vmatpush1.msra.mxu0 0.0
        %1226 = vmatprep.subr.mxu0 0.0
        %1227 = vmatpush1.msra.mxu0 0.0
        %1228 = vmatprep.subr.mxu0 0.0
        %1229 = vmatpush1.msra.mxu0 0.0
        %1230 = vmatprep.subr.mxu0 0.0
        %1231 = vmatpush1.msra.mxu0 0.0
        %1232 = vmatprep.subr.mxu0 0.0
        %1233 = vmatpush1.msra.mxu0 0.0
        %1234 = vmatprep.subr.mxu0 0.0
        %1235 = vmatpush1.msra.mxu0 0.0
        %1236 = vmatprep.mubr.f32.mxu0 0.0
        %1237 = vmatmul.mubr.f32.gmra.mrb[0].mxu0 %v1170
        %v1238 = vpop.f32.mrb[0].mxu0
        %v1239 = vadd.f32 0.0, %v1238
        %v1240 = vpop.f32.mrb[0].mxu0
        %1241 = vdwg.mxu0
        %v1242 = vadd.f32 %v1166, %v1239
        %v1243 = vxor.u32 %v1242, 2147483648
        %v1244 = vmul.f32 %v1243, 1.442695
        %v1245 = vpow.pop %v1244
        %v1246 = vadd.f32 %v1245, 1.0
        %v1247 = vrcp.pop %v1246
        %v1248 = vmul.f32 1.0, %v1247
        %v1249 = vtanh.pop %v1242
        %v1250 = vsel %vm434, %v1248, %v1249
        %v1251 = vmul.f32 %v1250, %v1157
        %1253 = vrot.lane.b32.xlu0 %v1250, 32
        %v1254 = vpop.permute.xlu0 %1253
        %v1256 = vmul.f32 %v1250, %v1254
        %1258 = vrot.lane.b32.xlu0 %v1256, 32
        %v1259 = vpop.permute.xlu0 %1258
        %v1261 = vadd.f32 %v1251, %v1259
        %v1262 = vtanh.pop %v1261
        %1264 = vrot.lane.b32.xlu0 %v1262, 32
        %v1265 = vpop.permute.xlu0 %1264
        %v1267 = vmul.f32 %v1250, %v1265
        %v1268 = vrot.slane %v643, 7
        %v1270 = vrot.slane %v747, 6
        %v1272 = vrot.slane %v851, 5
        %v1274 = vrot.slane %v955, 4
        %v1276 = vrot.slane %v1059, 3
        %v1278 = vrot.slane %v1163, 2
        %v1281 = vrot.slane %v1267, 1
        %vm1283 = vcmask 1040384
        %v1284 = vsel %vm1283, %v539, %v1268
        %vm1285 = vcmask 1041408
        %v1286 = vsel %vm1285, %v1284, %v1270
        %vm1287 = vcmask 1042432
        %v1288 = vsel %vm1287, %v1286, %v1272
        %v1289 = vsel %vm263, %v1288, %v1274
        %vm1290 = vcmask 1044480
        %v1291 = vsel %vm1290, %v1289, %v1276
        %vm1292 = vcmask 1045504
        %v1293 = vsel %vm1292, %v1291, %v1278
        %vm1294 = vcmask 1046528
        %v1295 = vsel %vm1294, %v1293, %v1281
        %1297 = vrot.lane.b32.xlu0 %v1295, 64
        %v1298 = vpop.permute.xlu0 %1297
        %1300 = vst.msk [vmem:[%s242] sm:$0xff] %vm440, %v1298
        %s1301 = sand.u32 %s159, 1
        %s1302 = scalar_lea.sflag [#allocation4], %s1301
        %s1303 = sand.u32 %s159, 1
        %s1304 = smul.addr %s1303, 8
        %s1305 = scalar_lea.vmem [#allocation3], %s1304
        // Predicated region
        $region45: #{inception_dxlstm_forward.1} parent=43 // pred_check
          %p1306 = pneg %p169
        $region46: #{inception_dxlstm_forward.1} parent=43 // pred_check_branch
          %1308 = sbr.rel (%p1306) target = $region48
        $region47: #{inception_dxlstm_forward.1} parent=43 // pred_region
          %s1310 = ssub.s32 128, 128
          %1311 = vsyncadd %s1302, %s1310
          %s1312 = smul.addr %s20, 128
          %s1313 = scalar_lea.hbm %s6, %s1312
          %s1315 = sshll.u32 %s1305, 4
          %s1316 = int_to_ptr.vmem [resolvable:$true] %s1315
          %1318 = dma.vmem_to_hbm [thread:$0]  %s1316, 128, %s1313, %s1302
        $region48: #{inception_dxlstm_forward.1} parent=43 // pred_fallthru
          _
      $region44: #{inception_dxlstm_forward.1} parent=5 // pred_fallthru
        _
      %p1319 = scmp.le.s32.totalorder 2, %s15
      // Predicated region
      $region49: #{inception_dxlstm_forward.1} parent=5 // pred_check
        %p1320 = pneg %p1319
      $region50: #{inception_dxlstm_forward.1} parent=5 // pred_check_branch
        %1322 = sbr.rel (%p1320) target = $region52
      $region51: #{inception_dxlstm_forward.1} parent=5 // pred_region
        %s1323 = ssub.s32 %s15, 2
        // Predicated region
        $region53: #{inception_dxlstm_forward.1} parent=51 // pred_check
          %p1324 = pneg %p175
        $region54: #{inception_dxlstm_forward.1} parent=51 // pred_check_branch
          %1326 = sbr.rel (%p1324) target = $region56
        $region55: #{inception_dxlstm_forward.1} parent=51 // pred_region
          %s1327 = sand.u32 %s160, 1
          %s1328 = scalar_lea.sflag [#allocation4], %s1327
          %s1329 = sand.u32 %s160, 1
          %s1330 = smul.addr %s1329, 8
          %s1331 = scalar_lea.vmem [#allocation3], %s1330
          %1332 = dma.done %s1328, 128
        $region56: #{inception_dxlstm_forward.1} parent=51 // pred_fallthru
          _
      $region52: #{inception_dxlstm_forward.1} parent=5 // pred_fallthru
        _
    $region6: #{inception_dxlstm_forward.1} parent=1 // loop_footer
      %s19 = sadd.s32 1, %s15
    $region7: #{inception_dxlstm_forward.1} parent=1 // loop_footer_branch
      %14 = sbr.rel target = $region3
    $region8: #{inception_dxlstm_forward.1} parent=1 // loop_exit
      _
    %1333 = vsyncpa [#allocation4], 1
    %s1334 = scalar_lea.sflag [#allocation4], 1
    %1335 = vsyncpa %s1334, 1

</llo_original>
